<compile_context>
chip_gen: v5e
topology: v5e:2x2
jax: 0.10.0
libtpu: 0.0.40
codegen_flags: <defaults>
</compile_context>

<pallas_src>
import numpy as np
import jax
import jax.numpy as jnp
from jax.experimental import pallas as pl
from jax.experimental.pallas import tpu as pltpu

# Model dimensions (fixed by HP2M / ProjectionNet / GlobalNet).
D_X = 140            # per-joint feature width fed to each ProjectionNet
D_Z = 100            # GlobalNet output width (z)
D_ZP = 128           # lane-padded z width
D_G = 60             # GlobalNet input width (20 joints * 3)
D_H = 256            # hidden width
D_OUT = 100          # ProjectionNet output width
D_OUTP = 128         # lane-padded output width
NUM_JOINTS = 20
N_AXES = 3
D_OSLAB = N_AXES * D_OUTP        # 384: lane-dense per-joint output slab (x|y|z)
VERTEXNUM = [45, 61, 43, 45, 92, 34, 41, 62, 44, 44, 58, 42, 40, 60, 41,
             35, 64, 28, 50, 62]                  # sums to 991
TOTAL_VERTS = sum(VERTEXNUM)                      # 991
NEG_SLOPE = 0.01                                  # nn.LeakyReLU() default
MAX_TB = 1024        # batch-tile cap: ~6 MB VMEM footprint, fits all generations


# ----------------------------- kernels --------------------------------------

def _global_kernel(g_ref, wg1_ref, bg1_ref, wg2_ref, bg2_ref, z_ref):
    g = g_ref[...]                                                   # (TB, 60) bf16
    h = jnp.dot(g, wg1_ref[...], preferred_element_type=jnp.float32) + bg1_ref[...]
    h = jnp.maximum(h, 0.0).astype(jnp.bfloat16)
    z = jnp.dot(h, wg2_ref[...], preferred_element_type=jnp.float32) + bg2_ref[...]
    z_ref[...] = jnp.maximum(z, 0.0).astype(z_ref.dtype)             # bf16, lane-padded


def _projection_kernel(xj_ref, z_ref, w1x_ref, w1z_ref, b1_ref,
                       w2_ref, b2_ref, w3_ref, b3_ref, o_ref):
    xj = xj_ref[...]                                                 # (TB, 140) bf16
    zz = z_ref[...]                                                  # (TB, 128) bf16
    # Layer 1 for all 3 axes at once (fused concat + axis-merged N=768 matmuls).
    h1 = (jnp.dot(xj, w1x_ref[...], preferred_element_type=jnp.float32)
          + jnp.dot(zz, w1z_ref[...], preferred_element_type=jnp.float32)
          + b1_ref[...])                                             # (TB, 768) f32
    h1 = h1.astype(jnp.bfloat16)
    # Layers 2-3 per axis (unrolled), writing lane-dense 128-wide slabs.
    for a in range(N_AXES):
        h1a = h1[:, a * D_H:(a + 1) * D_H]                           # (TB, 256) bf16
        h2 = jnp.dot(h1a, w2_ref[a], preferred_element_type=jnp.float32) + b2_ref[a]
        h2 = jnp.where(h2 > 0, h2, NEG_SLOPE * h2).astype(jnp.bfloat16)
        out = jnp.dot(h2, w3_ref[a], preferred_element_type=jnp.float32) + b3_ref[a]
        o_ref[:, a * D_OUTP:(a + 1) * D_OUTP] = out.astype(o_ref.dtype)


# ----------------------------- wrapper ---------------------------------------

def _tile_batch(b):
    if b <= MAX_TB:
        return b, b                  # single tile == full batch (always legal)
    tb = MAX_TB
    return ((b + tb - 1) // tb) * tb, tb


def _vertex_jr():
    jidx = np.concatenate([np.full(v, i, np.int32) for i, v in enumerate(VERTEXNUM)])
    ridx = np.concatenate([np.arange(v, dtype=np.int32) for v in VERTEXNUM])
    return jidx, ridx


def _gather_indices():
    """Flat lane indices into the (b_pad, 20*384) kernel output: (991, 3)."""
    jidx, ridx = _vertex_jr()
    axes = np.arange(N_AXES, dtype=np.int32)
    flat = jidx[:, None] * D_OSLAB + axes[None, :] * D_OUTP + ridx[:, None]
    return jnp.asarray(flat, dtype=jnp.int32)


def hp2m_forward(x, gloinfo, params):
    """x: (B, 20, 140) f32, gloinfo: (B, 60) f32 -> (B, 991, 3) f32."""
    (wg1, bg1, wg2p, bg2p, w1x_all, w1zp_all, b1_all, w2, b2, w3p, b3p) = params
    B, num, dx = x.shape
    assert num == NUM_JOINTS and dx == D_X and gloinfo.shape == (B, D_G)

    b_pad, tb = _tile_batch(B)
    t_tiles = b_pad // tb

    # Layout glue (plain JAX): joint-major activations, bf16 operands.
    xj = jnp.transpose(x, (1, 0, 2)).astype(jnp.bfloat16)            # (num, B, 140)
    g = gloinfo.astype(jnp.bfloat16)
    if b_pad != B:
        xj = jnp.pad(xj, ((0, 0), (0, b_pad - B), (0, 0)))
        g = jnp.pad(g, ((0, b_pad - B), (0, 0)))

    # ---- GlobalNet: z in the exact bf16 lane-padded layout the projection uses
    z = pl.pallas_call(
        _global_kernel,
        out_shape=jax.ShapeDtypeStruct((b_pad, D_ZP), jnp.bfloat16),
        grid=(t_tiles,),
        in_specs=[
            pl.BlockSpec((tb, D_G), lambda t: (t, 0)),
            pl.BlockSpec((D_G, D_H), lambda t: (0, 0)),
            pl.BlockSpec((1, D_H), lambda t: (0, 0)),
            pl.BlockSpec((D_H, D_ZP), lambda t: (0, 0)),
            pl.BlockSpec((1, D_ZP), lambda t: (0, 0)),
        ],
        out_specs=pl.BlockSpec((tb, D_ZP), lambda t: (t, 0)),
        compiler_params=pltpu.CompilerParams(dimension_semantics=("parallel",)),
    )(g, wg1, bg1, wg2p, bg2p)

    # ---- Projection: all 3 axes fused in-kernel, grid = (batch_tiles, joints).
    #      Weights: constant index -> VMEM-resident for the whole call.
    #      z: indexed only by the (outer) batch-tile axis -> fetched once/tile.
    proj = pl.pallas_call(
        _projection_kernel,
        out_shape=jax.ShapeDtypeStruct((b_pad, NUM_JOINTS * D_OSLAB), jnp.bfloat16),
        grid=(t_tiles, NUM_JOINTS),
        in_specs=[
            pl.BlockSpec((None, tb, D_X), lambda t, i: (i, t, 0)),
            pl.BlockSpec((tb, D_ZP), lambda t, i: (t, 0)),
            pl.BlockSpec((D_X, N_AXES * D_H), lambda t, i: (0, 0)),
            pl.BlockSpec((D_ZP, N_AXES * D_H), lambda t, i: (0, 0)),
            pl.BlockSpec((1, N_AXES * D_H), lambda t, i: (0, 0)),
            pl.BlockSpec((N_AXES, D_H, D_H), lambda t, i: (0, 0, 0)),
            pl.BlockSpec((N_AXES, 1, D_H), lambda t, i: (0, 0, 0)),
            pl.BlockSpec((N_AXES, D_H, D_OUTP), lambda t, i: (0, 0, 0)),
            pl.BlockSpec((N_AXES, 1, D_OUTP), lambda t, i: (0, 0, 0)),
        ],
        out_specs=pl.BlockSpec((tb, D_OSLAB), lambda t, i: (t, i)),
        compiler_params=pltpu.CompilerParams(
            dimension_semantics=("parallel", "parallel")),
    )(xj, z, w1x_all, w1zp_all, b1_all, w2, b2, w3p, b3p)

    # ---- Vertex selection / axis stacking: one lane gather with batch as the
    #      sublane dim (no big lane-sparse transpose), then upcast the small result.
    proj = proj[:B]                                                  # (B, 20*384) bf16
    out = jnp.take(proj, _gather_indices(), axis=1)                  # (B, 991, 3) bf16
    out = out.astype(jnp.float32)
    # mirrors torch .squeeze(); note: also squeezes the batch dim when B == 1
    return jnp.squeeze(out)


# ----------------------------- params / reference ----------------------------

def init_params(key):
    """Deterministic synthetic parameters with PyTorch Linear init scaling."""
    def linear(k, fan_in, fan_out):
        kw, kb = jax.random.split(k)
        bound = 1.0 / np.sqrt(fan_in)
        w = jax.random.uniform(kw, (fan_in, fan_out), jnp.float32, -bound, bound)
        b = jax.random.uniform(kb, (1, fan_out), jnp.float32, -bound, bound)
        return w, b

    keys = jax.random.split(key, 5)
    wg1, bg1 = linear(keys[0], D_G, D_H)                             # GlobalNet L1
    wg2, bg2 = linear(keys[1], D_H, D_OUT)                           # GlobalNet L2

    w1s, b1s, w2s, b2s, w3s, b3s = [], [], [], [], [], []
    for a in range(N_AXES):                                          # projection_{x,y,z}
        k1, k2, k3 = jax.random.split(keys[2 + a], 3)
        w1, b1 = linear(k1, D_X + D_Z, D_H)
        w2, b2 = linear(k2, D_H, D_H)
        w3, b3 = linear(k3, D_H, D_OUT)
        w1s.append(w1); b1s.append(b1)
        w2s.append(w2); b2s.append(b2)
        w3s.append(w3); b3s.append(b3)
    w1 = jnp.stack(w1s); b1 = jnp.stack(b1s)
    w2 = jnp.stack(w2s); b2 = jnp.stack(b2s)
    w3 = jnp.stack(w3s); b3 = jnp.stack(b3s)

    # Kernel layout: bf16 weights, f32 biases, lane-padded z/out dims,
    # axis-merged layer-1 (N = 3*256 = 768).
    w1x = w1[:, :D_X, :].astype(jnp.bfloat16)                        # (3, 140, 256)
    w1z = w1[:, D_X:, :].astype(jnp.bfloat16)                        # (3, 100, 256)
    w1zp = jnp.pad(w1z, ((0, 0), (0, D_ZP - D_Z), (0, 0)))           # (3, 128, 256)
    w1x_all = jnp.concatenate([w1x[a] for a in range(N_AXES)], axis=1)    # (140, 768)
    w1zp_all = jnp.concatenate([w1zp[a] for a in range(N_AXES)], axis=1)  # (128, 768)
    b1_all = jnp.concatenate([b1[a] for a in range(N_AXES)], axis=1)      # (1, 768)

    w3p = jnp.pad(w3.astype(jnp.bfloat16), ((0, 0), (0, 0), (0, D_OUTP - D_OUT)))
    b3p = jnp.pad(b3, ((0, 0), (0, 0), (0, D_OUTP - D_OUT)))
    wg2p = jnp.pad(wg2.astype(jnp.bfloat16), ((0, 0), (0, D_ZP - D_OUT)))
    bg2p = jnp.pad(bg2, ((0, 0), (0, D_ZP - D_OUT)))

    kernel_params = (wg1.astype(jnp.bfloat16), bg1, wg2p, bg2p,
                     w1x_all, w1zp_all, b1_all,
                     w2.astype(jnp.bfloat16), b2, w3p, b3p)
    ref_params = (wg1.astype(jnp.bfloat16), bg1, wg2.astype(jnp.bfloat16), bg2,
                  w1x, w1z, b1, w2.astype(jnp.bfloat16), b2,
                  w3.astype(jnp.bfloat16), b3)
    return kernel_params, ref_params


def reference_forward(x, gloinfo, ref_params):
    """Plain-JAX HP2M forward with the same bf16 operand / f32 accumulate scheme."""
    wg1, bg1, wg2, bg2, w1x, w1z, b1, w2, b2, w3, b3 = ref_params
    B, num, _ = x.shape
    f32 = jnp.float32

    h = jnp.dot(gloinfo.astype(jnp.bfloat16), wg1, preferred_element_type=f32) + bg1
    h = jnp.maximum(h, 0.0).astype(jnp.bfloat16)
    z = jnp.dot(h, wg2, preferred_element_type=f32) + bg2
    z = jnp.maximum(z, 0.0).astype(jnp.bfloat16)                     # (B, 100)

    y = jnp.transpose(x, (1, 0, 2)).astype(jnp.bfloat16)             # (num, B, 140)
    yb = y.reshape(num * B, D_X)
    zb = jnp.broadcast_to(z[None], (num, B, D_Z)).reshape(num * B, D_Z)

    outs = []
    for a in range(N_AXES):
        h1 = (jnp.dot(yb, w1x[a], preferred_element_type=f32)
              + jnp.dot(zb, w1z[a], preferred_element_type=f32) + b1[a])
        h1 = h1.astype(jnp.bfloat16)
        h2 = jnp.dot(h1, w2[a], preferred_element_type=f32) + b2[a]
        h2 = jnp.where(h2 > 0, h2, NEG_SLOPE * h2).astype(jnp.bfloat16)
        o = jnp.dot(h2, w3[a], preferred_element_type=f32) + b3[a]
        o = o.astype(jnp.bfloat16).astype(f32)        # match kernel's bf16 output store
        outs.append(o.reshape(num, B, D_OUT))
    proj = jnp.stack(outs, 0)                                        # (3, num, B, 100)
    proj = jnp.transpose(proj, (2, 1, 3, 0))                         # (B, num, 100, 3)
    jidx, ridx = _vertex_jr()
    return jnp.squeeze(proj[:, jnp.asarray(jidx), jnp.asarray(ridx), :])   # (B, 991, 3)


# ----------------------------- demo ------------------------------------------

if __name__ == "__main__":
    key = jax.random.PRNGKey(0)
    kx, kg, kp = jax.random.split(key, 3)

    B = 2
    x = jax.random.normal(kx, (B, NUM_JOINTS, D_X), jnp.float32)
    gloinfo = jax.random.normal(kg, (B, D_G), jnp.float32)
    kernel_params, ref_params = init_params(kp)

    out = jax.jit(hp2m_forward)(x, gloinfo, kernel_params)
    out = jax.block_until_ready(out)

    ref = reference_forward(x, gloinfo, ref_params)
    assert out.shape == (B, TOTAL_VERTS, 3), out.shape
    max_err = float(jnp.max(jnp.abs(out - ref)))
    assert jnp.allclose(out, ref, atol=2e-2, rtol=2e-2), f"mismatch vs reference: {max_err}"

    print("KERNEL_OK")
</pallas_src>

<mosaic_0001>
module attributes {stable_mosaic.version = 11 : i64} {
  func.func @_global_kernel(%arg0: i32, %arg1: memref<2x60xbf16, #tpu.memory_space<vmem>>, %arg2: memref<60x256xbf16, #tpu.memory_space<vmem>>, %arg3: memref<1x256xf32, #tpu.memory_space<vmem>>, %arg4: memref<256x128xbf16, #tpu.memory_space<vmem>>, %arg5: memref<1x128xf32, #tpu.memory_space<vmem>>, %arg6: memref<2x128xbf16, #tpu.memory_space<vmem>>) attributes {dimension_semantics = [#tpu.dimension_semantics<parallel>], iteration_bounds = array<i64: 1>, scalar_prefetch = 0 : i64, scratch_operands = 0 : i64, tpu.core_type = #tpu.core_type<tc>, window_params = [{transform_indices = @transform_0, window_bounds = array<i64: 2, 60>}, {pipeline_mode = #tpu.pipeline_mode<synchronous>, transform_indices = @transform_1, window_bounds = array<i64: 60, 256>}, {pipeline_mode = #tpu.pipeline_mode<synchronous>, transform_indices = @transform_2, window_bounds = array<i64: 1, 256>}, {pipeline_mode = #tpu.pipeline_mode<synchronous>, transform_indices = @transform_3, window_bounds = array<i64: 256, 128>}, {pipeline_mode = #tpu.pipeline_mode<synchronous>, transform_indices = @transform_4, window_bounds = array<i64: 1, 128>}, {transform_indices = @transform_5, window_bounds = array<i64: 2, 128>}]} {
    %c0 = arith.constant 0 : index
    %c0_0 = arith.constant 0 : index
    %0 = vector.load %arg1[%c0, %c0_0] : memref<2x60xbf16, #tpu.memory_space<vmem>>, vector<2x60xbf16>
    %c0_1 = arith.constant 0 : index
    %c0_2 = arith.constant 0 : index
    %1 = vector.load %arg2[%c0_1, %c0_2] : memref<60x256xbf16, #tpu.memory_space<vmem>>, vector<60x256xbf16>
    %cst = arith.constant dense<0.000000e+00> : vector<2x256xf32>
    %2 = tpu.matmul %0, %1, %cst {dimension_numbers = #tpu.dot_dimension_numbers<[1], [0], [0], [1], [0, 0, 1, 1], [], []>} : vector<2x60xbf16>, vector<60x256xbf16>, vector<2x256xf32> -> vector<2x256xf32>
    %c0_3 = arith.constant 0 : index
    %c0_4 = arith.constant 0 : index
    %3 = vector.load %arg3[%c0_3, %c0_4] : memref<1x256xf32, #tpu.memory_space<vmem>>, vector<1x256xf32>
    %4 = vector.broadcast %3 : vector<1x256xf32> to vector<2x256xf32>
    %5 = arith.addf %2, %4 : vector<2x256xf32>
    %cst_5 = arith.constant 0.000000e+00 : f32
    %6 = vector.broadcast %cst_5 : f32 to vector<2x256xf32>
    %7 = arith.maximumf %5, %6 : vector<2x256xf32>
    %8 = arith.truncf %7 : vector<2x256xf32> to vector<2x256xbf16>
    %c0_6 = arith.constant 0 : index
    %c0_7 = arith.constant 0 : index
    %9 = vector.load %arg4[%c0_6, %c0_7] : memref<256x128xbf16, #tpu.memory_space<vmem>>, vector<256x128xbf16>
    %cst_8 = arith.constant dense<0.000000e+00> : vector<2x128xf32>
    %10 = tpu.matmul %8, %9, %cst_8 {dimension_numbers = #tpu.dot_dimension_numbers<[1], [0], [0], [1], [0, 0, 1, 1], [], []>} : vector<2x256xbf16>, vector<256x128xbf16>, vector<2x128xf32> -> vector<2x128xf32>
    %c0_9 = arith.constant 0 : index
    %c0_10 = arith.constant 0 : index
    %11 = vector.load %arg5[%c0_9, %c0_10] : memref<1x128xf32, #tpu.memory_space<vmem>>, vector<1x128xf32>
    %12 = vector.broadcast %11 : vector<1x128xf32> to vector<2x128xf32>
    %13 = arith.addf %10, %12 : vector<2x128xf32>
    %cst_11 = arith.constant 0.000000e+00 : f32
    %14 = vector.broadcast %cst_11 : f32 to vector<2x128xf32>
    %15 = arith.maximumf %13, %14 : vector<2x128xf32>
    %16 = arith.truncf %15 : vector<2x128xf32> to vector<2x128xbf16>
    %c0_12 = arith.constant 0 : index
    %c0_13 = arith.constant 0 : index
    %17 = vector.load %arg6[%c0_12, %c0_13] : memref<2x128xbf16, #tpu.memory_space<vmem>>, vector<2x128xbf16>
    tpu.vector_store %arg6[%c0_12, %c0_13], %16 {strides = array<i32>} : memref<2x128xbf16, #tpu.memory_space<vmem>>, vector<2x128xbf16>,
    return
  }
  func.func @transform_0(%arg0: i32) -> (i32, i32) {
    %c0_i32 = arith.constant 0 : i32
    %c0_i32_0 = arith.constant 0 : i32
    return %arg0, %c0_i32 : i32, i32
  }
  func.func @transform_1(%arg0: i32) -> (i32, i32) {
    %c0_i32 = arith.constant 0 : i32
    %c0_i32_0 = arith.constant 0 : i32
    %c0_i32_1 = arith.constant 0 : i32
    return %c0_i32, %c0_i32_0 : i32, i32
  }
  func.func @transform_2(%arg0: i32) -> (i32, i32) {
    %c0_i32 = arith.constant 0 : i32
    %c0_i32_0 = arith.constant 0 : i32
    %c0_i32_1 = arith.constant 0 : i32
    return %c0_i32, %c0_i32_0 : i32, i32
  }
  func.func @transform_3(%arg0: i32) -> (i32, i32) {
    %c0_i32 = arith.constant 0 : i32
    %c0_i32_0 = arith.constant 0 : i32
    %c0_i32_1 = arith.constant 0 : i32
    return %c0_i32, %c0_i32_0 : i32, i32
  }
  func.func @transform_4(%arg0: i32) -> (i32, i32) {
    %c0_i32 = arith.constant 0 : i32
    %c0_i32_0 = arith.constant 0 : i32
    %c0_i32_1 = arith.constant 0 : i32
    return %c0_i32, %c0_i32_0 : i32, i32
  }
  func.func @transform_5(%arg0: i32) -> (i32, i32) {
    %c0_i32 = arith.constant 0 : i32
    %c0_i32_0 = arith.constant 0 : i32
    return %arg0, %c0_i32 : i32, i32
  }
}

module attributes {stable_mosaic.version = 11 : i64} {
  func.func @_projection_kernel(%arg0: i32, %arg1: i32, %arg2: memref<1x2x140xbf16, #tpu.memory_space<vmem>>, %arg3: memref<2x128xbf16, #tpu.memory_space<vmem>>, %arg4: memref<140x768xbf16, #tpu.memory_space<vmem>>, %arg5: memref<128x768xbf16, #tpu.memory_space<vmem>>, %arg6: memref<1x768xf32, #tpu.memory_space<vmem>>, %arg7: memref<3x256x256xbf16, #tpu.memory_space<vmem>>, %arg8: memref<3x1x256xf32, #tpu.memory_space<vmem>>, %arg9: memref<3x256x128xbf16, #tpu.memory_space<vmem>>, %arg10: memref<3x1x128xf32, #tpu.memory_space<vmem>>, %arg11: memref<2x384xbf16, #tpu.memory_space<vmem>>) attributes {dimension_semantics = [#tpu.dimension_semantics<parallel>, #tpu.dimension_semantics<parallel>], iteration_bounds = array<i64: 1, 20>, scalar_prefetch = 0 : i64, scratch_operands = 0 : i64, tpu.core_type = #tpu.core_type<tc>, window_params = [{transform_indices = @transform_0, window_bounds = array<i64: 1, 2, 140>}, {transform_indices = @transform_1, window_bounds = array<i64: 2, 128>}, {pipeline_mode = #tpu.pipeline_mode<synchronous>, transform_indices = @transform_2, window_bounds = array<i64: 140, 768>}, {pipeline_mode = #tpu.pipeline_mode<synchronous>, transform_indices = @transform_3, window_bounds = array<i64: 128, 768>}, {pipeline_mode = #tpu.pipeline_mode<synchronous>, transform_indices = @transform_4, window_bounds = array<i64: 1, 768>}, {pipeline_mode = #tpu.pipeline_mode<synchronous>, transform_indices = @transform_5, window_bounds = array<i64: 3, 256, 256>}, {pipeline_mode = #tpu.pipeline_mode<synchronous>, transform_indices = @transform_6, window_bounds = array<i64: 3, 1, 256>}, {pipeline_mode = #tpu.pipeline_mode<synchronous>, transform_indices = @transform_7, window_bounds = array<i64: 3, 256, 128>}, {pipeline_mode = #tpu.pipeline_mode<synchronous>, transform_indices = @transform_8, window_bounds = array<i64: 3, 1, 128>}, {transform_indices = @transform_9, window_bounds = array<i64: 2, 384>}]} {
    %c0 = arith.constant 0 : index
    %c0_0 = arith.constant 0 : index
    %c0_1 = arith.constant 0 : index
    %0 = vector.load %arg2[%c0, %c0_0, %c0_1] : memref<1x2x140xbf16, #tpu.memory_space<vmem>>, vector<1x2x140xbf16>
    %1 = vector.shape_cast %0 : vector<1x2x140xbf16> to vector<2x140xbf16>
    %c0_2 = arith.constant 0 : index
    %c0_3 = arith.constant 0 : index
    %2 = vector.load %arg3[%c0_2, %c0_3] : memref<2x128xbf16, #tpu.memory_space<vmem>>, vector<2x128xbf16>
    %c0_4 = arith.constant 0 : index
    %c0_5 = arith.constant 0 : index
    %3 = vector.load %arg4[%c0_4, %c0_5] : memref<140x768xbf16, #tpu.memory_space<vmem>>, vector<140x768xbf16>
    %cst = arith.constant dense<0.000000e+00> : vector<2x768xf32>
    %4 = tpu.matmul %1, %3, %cst {dimension_numbers = #tpu.dot_dimension_numbers<[1], [0], [0], [1], [0, 0, 1, 1], [], []>} : vector<2x140xbf16>, vector<140x768xbf16>, vector<2x768xf32> -> vector<2x768xf32>
    %c0_6 = arith.constant 0 : index
    %c0_7 = arith.constant 0 : index
    %5 = vector.load %arg5[%c0_6, %c0_7] : memref<128x768xbf16, #tpu.memory_space<vmem>>, vector<128x768xbf16>
    %cst_8 = arith.constant dense<0.000000e+00> : vector<2x768xf32>
    %6 = tpu.matmul %2, %5, %cst_8 {dimension_numbers = #tpu.dot_dimension_numbers<[1], [0], [0], [1], [0, 0, 1, 1], [], []>} : vector<2x128xbf16>, vector<128x768xbf16>, vector<2x768xf32> -> vector<2x768xf32>
    %7 = arith.addf %4, %6 : vector<2x768xf32>
    %c0_9 = arith.constant 0 : index
    %c0_10 = arith.constant 0 : index
    %8 = vector.load %arg6[%c0_9, %c0_10] : memref<1x768xf32, #tpu.memory_space<vmem>>, vector<1x768xf32>
    %9 = vector.broadcast %8 : vector<1x768xf32> to vector<2x768xf32>
    %10 = arith.addf %7, %9 : vector<2x768xf32>
    %11 = arith.truncf %10 : vector<2x768xf32> to vector<2x768xbf16>
    %12 = vector.extract_strided_slice %11 {offsets = [0, 0], sizes = [2, 256], strides = [1, 1]} : vector<2x768xbf16> to vector<2x256xbf16>
    %c0_11 = arith.constant 0 : index
    %c0_12 = arith.constant 0 : index
    %c0_13 = arith.constant 0 : index
    %13 = vector.load %arg7[%c0_11, %c0_12, %c0_13] : memref<3x256x256xbf16, #tpu.memory_space<vmem>>, vector<1x256x256xbf16>
    %14 = vector.shape_cast %13 : vector<1x256x256xbf16> to vector<256x256xbf16>
    %cst_14 = arith.constant dense<0.000000e+00> : vector<2x256xf32>
    %15 = tpu.matmul %12, %14, %cst_14 {dimension_numbers = #tpu.dot_dimension_numbers<[1], [0], [0], [1], [0, 0, 1, 1], [], []>} : vector<2x256xbf16>, vector<256x256xbf16>, vector<2x256xf32> -> vector<2x256xf32>
    %c0_15 = arith.constant 0 : index
    %c0_16 = arith.constant 0 : index
    %c0_17 = arith.constant 0 : index
    %16 = vector.load %arg8[%c0_15, %c0_16, %c0_17] : memref<3x1x256xf32, #tpu.memory_space<vmem>>, vector<1x1x256xf32>
    %17 = vector.shape_cast %16 : vector<1x1x256xf32> to vector<1x256xf32>
    %18 = vector.broadcast %17 : vector<1x256xf32> to vector<2x256xf32>
    %19 = arith.addf %15, %18 : vector<2x256xf32>
    %cst_18 = arith.constant 0.000000e+00 : f32
    %20 = vector.broadcast %cst_18 : f32 to vector<2x256xf32>
    %21 = arith.cmpf ogt, %19, %20 : vector<2x256xf32>
    %cst_19 = arith.constant 0.00999999977 : f32
    %22 = vector.broadcast %cst_19 : f32 to vector<2x256xf32>
    %23 = arith.mulf %22, %19 : vector<2x256xf32>
    %24 = arith.select %21, %19, %23 : vector<2x256xi1>, vector<2x256xf32>
    %25 = arith.truncf %24 : vector<2x256xf32> to vector<2x256xbf16>
    %c0_20 = arith.constant 0 : index
    %c0_21 = arith.constant 0 : index
    %c0_22 = arith.constant 0 : index
    %26 = vector.load %arg9[%c0_20, %c0_21, %c0_22] : memref<3x256x128xbf16, #tpu.memory_space<vmem>>, vector<1x256x128xbf16>
    %27 = vector.shape_cast %26 : vector<1x256x128xbf16> to vector<256x128xbf16>
    %cst_23 = arith.constant dense<0.000000e+00> : vector<2x128xf32>
    %28 = tpu.matmul %25, %27, %cst_23 {dimension_numbers = #tpu.dot_dimension_numbers<[1], [0], [0], [1], [0, 0, 1, 1], [], []>} : vector<2x256xbf16>, vector<256x128xbf16>, vector<2x128xf32> -> vector<2x128xf32>
    %c0_24 = arith.constant 0 : index
    %c0_25 = arith.constant 0 : index
    %c0_26 = arith.constant 0 : index
    %29 = vector.load %arg10[%c0_24, %c0_25, %c0_26] : memref<3x1x128xf32, #tpu.memory_space<vmem>>, vector<1x1x128xf32>
    %30 = vector.shape_cast %29 : vector<1x1x128xf32> to vector<1x128xf32>
    %31 = vector.broadcast %30 : vector<1x128xf32> to vector<2x128xf32>
    %32 = arith.addf %28, %31 : vector<2x128xf32>
    %33 = arith.truncf %32 : vector<2x128xf32> to vector<2x128xbf16>
    %c0_27 = arith.constant 0 : index
    %c0_28 = arith.constant 0 : index
    %34 = vector.load %arg11[%c0_27, %c0_28] : memref<2x384xbf16, #tpu.memory_space<vmem>>, vector<2x128xbf16>
    tpu.vector_store %arg11[%c0_27, %c0_28], %33 {strides = array<i32>} : memref<2x384xbf16, #tpu.memory_space<vmem>>, vector<2x128xbf16>,
    %35 = vector.extract_strided_slice %11 {offsets = [0, 256], sizes = [2, 256], strides = [1, 1]} : vector<2x768xbf16> to vector<2x256xbf16>
    %c1 = arith.constant 1 : index
    %c0_29 = arith.constant 0 : index
    %c0_30 = arith.constant 0 : index
    %36 = vector.load %arg7[%c1, %c0_29, %c0_30] : memref<3x256x256xbf16, #tpu.memory_space<vmem>>, vector<1x256x256xbf16>
    %37 = vector.shape_cast %36 : vector<1x256x256xbf16> to vector<256x256xbf16>
    %cst_31 = arith.constant dense<0.000000e+00> : vector<2x256xf32>
    %38 = tpu.matmul %35, %37, %cst_31 {dimension_numbers = #tpu.dot_dimension_numbers<[1], [0], [0], [1], [0, 0, 1, 1], [], []>} : vector<2x256xbf16>, vector<256x256xbf16>, vector<2x256xf32> -> vector<2x256xf32>
    %c1_32 = arith.constant 1 : index
    %c0_33 = arith.constant 0 : index
    %c0_34 = arith.constant 0 : index
    %39 = vector.load %arg8[%c1_32, %c0_33, %c0_34] : memref<3x1x256xf32, #tpu.memory_space<vmem>>, vector<1x1x256xf32>
    %40 = vector.shape_cast %39 : vector<1x1x256xf32> to vector<1x256xf32>
    %41 = vector.broadcast %40 : vector<1x256xf32> to vector<2x256xf32>
    %42 = arith.addf %38, %41 : vector<2x256xf32>
    %cst_35 = arith.constant 0.000000e+00 : f32
    %43 = vector.broadcast %cst_35 : f32 to vector<2x256xf32>
    %44 = arith.cmpf ogt, %42, %43 : vector<2x256xf32>
    %cst_36 = arith.constant 0.00999999977 : f32
    %45 = vector.broadcast %cst_36 : f32 to vector<2x256xf32>
    %46 = arith.mulf %45, %42 : vector<2x256xf32>
    %47 = arith.select %44, %42, %46 : vector<2x256xi1>, vector<2x256xf32>
    %48 = arith.truncf %47 : vector<2x256xf32> to vector<2x256xbf16>
    %c1_37 = arith.constant 1 : index
    %c0_38 = arith.constant 0 : index
    %c0_39 = arith.constant 0 : index
    %49 = vector.load %arg9[%c1_37, %c0_38, %c0_39] : memref<3x256x128xbf16, #tpu.memory_space<vmem>>, vector<1x256x128xbf16>
    %50 = vector.shape_cast %49 : vector<1x256x128xbf16> to vector<256x128xbf16>
    %cst_40 = arith.constant dense<0.000000e+00> : vector<2x128xf32>
    %51 = tpu.matmul %48, %50, %cst_40 {dimension_numbers = #tpu.dot_dimension_numbers<[1], [0], [0], [1], [0, 0, 1, 1], [], []>} : vector<2x256xbf16>, vector<256x128xbf16>, vector<2x128xf32> -> vector<2x128xf32>
    %c1_41 = arith.constant 1 : index
    %c0_42 = arith.constant 0 : index
    %c0_43 = arith.constant 0 : index
    %52 = vector.load %arg10[%c1_41, %c0_42, %c0_43] : memref<3x1x128xf32, #tpu.memory_space<vmem>>, vector<1x1x128xf32>
    %53 = vector.shape_cast %52 : vector<1x1x128xf32> to vector<1x128xf32>
    %54 = vector.broadcast %53 : vector<1x128xf32> to vector<2x128xf32>
    %55 = arith.addf %51, %54 : vector<2x128xf32>
    %56 = arith.truncf %55 : vector<2x128xf32> to vector<2x128xbf16>
    %c0_44 = arith.constant 0 : index
    %c128 = arith.constant 128 : index
    %57 = vector.load %arg11[%c0_44, %c128] : memref<2x384xbf16, #tpu.memory_space<vmem>>, vector<2x128xbf16>
    tpu.vector_store %arg11[%c0_44, %c128], %56 {strides = array<i32>} : memref<2x384xbf16, #tpu.memory_space<vmem>>, vector<2x128xbf16>,
    %58 = vector.extract_strided_slice %11 {offsets = [0, 512], sizes = [2, 256], strides = [1, 1]} : vector<2x768xbf16> to vector<2x256xbf16>
    %c2 = arith.constant 2 : index
    %c0_45 = arith.constant 0 : index
    %c0_46 = arith.constant 0 : index
    %59 = vector.load %arg7[%c2, %c0_45, %c0_46] : memref<3x256x256xbf16, #tpu.memory_space<vmem>>, vector<1x256x256xbf16>
    %60 = vector.shape_cast %59 : vector<1x256x256xbf16> to vector<256x256xbf16>
    %cst_47 = arith.constant dense<0.000000e+00> : vector<2x256xf32>
    %61 = tpu.matmul %58, %60, %cst_47 {dimension_numbers = #tpu.dot_dimension_numbers<[1], [0], [0], [1], [0, 0, 1, 1], [], []>} : vector<2x256xbf16>, vector<256x256xbf16>, vector<2x256xf32> -> vector<2x256xf32>
    %c2_48 = arith.constant 2 : index
    %c0_49 = arith.constant 0 : index
    %c0_50 = arith.constant 0 : index
    %62 = vector.load %arg8[%c2_48, %c0_49, %c0_50] : memref<3x1x256xf32, #tpu.memory_space<vmem>>, vector<1x1x256xf32>
    %63 = vector.shape_cast %62 : vector<1x1x256xf32> to vector<1x256xf32>
    %64 = vector.broadcast %63 : vector<1x256xf32> to vector<2x256xf32>
    %65 = arith.addf %61, %64 : vector<2x256xf32>
    %cst_51 = arith.constant 0.000000e+00 : f32
    %66 = vector.broadcast %cst_51 : f32 to vector<2x256xf32>
    %67 = arith.cmpf ogt, %65, %66 : vector<2x256xf32>
    %cst_52 = arith.constant 0.00999999977 : f32
    %68 = vector.broadcast %cst_52 : f32 to vector<2x256xf32>
    %69 = arith.mulf %68, %65 : vector<2x256xf32>
    %70 = arith.select %67, %65, %69 : vector<2x256xi1>, vector<2x256xf32>
    %71 = arith.truncf %70 : vector<2x256xf32> to vector<2x256xbf16>
    %c2_53 = arith.constant 2 : index
    %c0_54 = arith.constant 0 : index
    %c0_55 = arith.constant 0 : index
    %72 = vector.load %arg9[%c2_53, %c0_54, %c0_55] : memref<3x256x128xbf16, #tpu.memory_space<vmem>>, vector<1x256x128xbf16>
    %73 = vector.shape_cast %72 : vector<1x256x128xbf16> to vector<256x128xbf16>
    %cst_56 = arith.constant dense<0.000000e+00> : vector<2x128xf32>
    %74 = tpu.matmul %71, %73, %cst_56 {dimension_numbers = #tpu.dot_dimension_numbers<[1], [0], [0], [1], [0, 0, 1, 1], [], []>} : vector<2x256xbf16>, vector<256x128xbf16>, vector<2x128xf32> -> vector<2x128xf32>
    %c2_57 = arith.constant 2 : index
    %c0_58 = arith.constant 0 : index
    %c0_59 = arith.constant 0 : index
    %75 = vector.load %arg10[%c2_57, %c0_58, %c0_59] : memref<3x1x128xf32, #tpu.memory_space<vmem>>, vector<1x1x128xf32>
    %76 = vector.shape_cast %75 : vector<1x1x128xf32> to vector<1x128xf32>
    %77 = vector.broadcast %76 : vector<1x128xf32> to vector<2x128xf32>
    %78 = arith.addf %74, %77 : vector<2x128xf32>
    %79 = arith.truncf %78 : vector<2x128xf32> to vector<2x128xbf16>
    %c0_60 = arith.constant 0 : index
    %c256 = arith.constant 256 : index
    %80 = vector.load %arg11[%c0_60, %c256] : memref<2x384xbf16, #tpu.memory_space<vmem>>, vector<2x128xbf16>
    tpu.vector_store %arg11[%c0_60, %c256], %79 {strides = array<i32>} : memref<2x384xbf16, #tpu.memory_space<vmem>>, vector<2x128xbf16>,
    return
  }
  func.func @transform_0(%arg0: i32, %arg1: i32) -> (i32, i32, i32) {
    %c0_i32 = arith.constant 0 : i32
    %c0_i32_0 = arith.constant 0 : i32
    return %arg1, %arg0, %c0_i32 : i32, i32, i32
  }
  func.func @transform_1(%arg0: i32, %arg1: i32) -> (i32, i32) {
    %c0_i32 = arith.constant 0 : i32
    %c0_i32_0 = arith.constant 0 : i32
    return %arg0, %c0_i32 : i32, i32
  }
  func.func @transform_2(%arg0: i32, %arg1: i32) -> (i32, i32) {
    %c0_i32 = arith.constant 0 : i32
    %c0_i32_0 = arith.constant 0 : i32
    %c0_i32_1 = arith.constant 0 : i32
    return %c0_i32, %c0_i32_0 : i32, i32
  }
  func.func @transform_3(%arg0: i32, %arg1: i32) -> (i32, i32) {
    %c0_i32 = arith.constant 0 : i32
    %c0_i32_0 = arith.constant 0 : i32
    %c0_i32_1 = arith.constant 0 : i32
    return %c0_i32, %c0_i32_0 : i32, i32
  }
  func.func @transform_4(%arg0: i32, %arg1: i32) -> (i32, i32) {
    %c0_i32 = arith.constant 0 : i32
    %c0_i32_0 = arith.constant 0 : i32
    %c0_i32_1 = arith.constant 0 : i32
    return %c0_i32, %c0_i32_0 : i32, i32
  }
  func.func @transform_5(%arg0: i32, %arg1: i32) -> (i32, i32, i32) {
    %c0_i32 = arith.constant 0 : i32
    %c0_i32_0 = arith.constant 0 : i32
    %c0_i32_1 = arith.constant 0 : i32
    %c0_i32_2 = arith.constant 0 : i32
    return %c0_i32, %c0_i32_0, %c0_i32_1 : i32, i32, i32
  }
  func.func @transform_6(%arg0: i32, %arg1: i32) -> (i32, i32, i32) {
    %c0_i32 = arith.constant 0 : i32
    %c0_i32_0 = arith.constant 0 : i32
    %c0_i32_1 = arith.constant 0 : i32
    %c0_i32_2 = arith.constant 0 : i32
    return %c0_i32, %c0_i32_0, %c0_i32_1 : i32, i32, i32
  }
  func.func @transform_7(%arg0: i32, %arg1: i32) -> (i32, i32, i32) {
    %c0_i32 = arith.constant 0 : i32
    %c0_i32_0 = arith.constant 0 : i32
    %c0_i32_1 = arith.constant 0 : i32
    %c0_i32_2 = arith.constant 0 : i32
    return %c0_i32, %c0_i32_0, %c0_i32_1 : i32, i32, i32
  }
  func.func @transform_8(%arg0: i32, %arg1: i32) -> (i32, i32, i32) {
    %c0_i32 = arith.constant 0 : i32
    %c0_i32_0 = arith.constant 0 : i32
    %c0_i32_1 = arith.constant 0 : i32
    %c0_i32_2 = arith.constant 0 : i32
    return %c0_i32, %c0_i32_0, %c0_i32_1 : i32, i32, i32
  }
  func.func @transform_9(%arg0: i32, %arg1: i32) -> (i32, i32) {
    %c0_i32 = arith.constant 0 : i32
    return %arg0, %arg1 : i32, i32
  }
}

</mosaic_0001>

<llo_original>
// kernel: hp2m_forward.2
$region0: #{hp2m_forward.2}
  #allocation0 [shape = 'u32[]', space=smem, size = 0x4, offset = 0x4, fixed_abs, tag = 'smem constant byte address 0x4 - core index']
  #allocation1 [shape = 'u32[72,128]{1,0:T(1,128)}', space=vmem, size = 0x9000, scoped, tag = 'internal scratch']
  %s0 = inlined_call_operand.vmem [shape: bf16[2,60], index: 0, kind: input, shape index: {}]
  %s1 = inlined_call_operand.hbm [shape: bf16[60,256], index: 1, kind: input, shape index: {}]
  %s2 = inlined_call_operand.hbm [shape: f32[1,256], index: 2, kind: input, shape index: {}]
  %s3 = inlined_call_operand.hbm [shape: bf16[256,128], index: 3, kind: input, shape index: {}]
  %s4 = inlined_call_operand.hbm [shape: f32[1,128], index: 4, kind: input, shape index: {}]
  %s5 = inlined_call_operand.vmem [shape: bf16[2,128], index: 5, kind: output, shape index: {}]
  %s6 = sld [smem:[#allocation0]]
  $region46: #{hp2m_forward.2} parent=0
    _
  %s8 = ssub.s32 1, %s6
  %s9 = scalar_select 0, %s8, %s6
  $region1: #{hp2m_forward.2} parent=0
    #allocation2 [shape = 'u8[32768]{0}', space=vmem, size = 0x8000, scoped, tag = 'input window, operand 1, single buffered']
    #allocation3 [shape = 's32[1]{0}', space=sflag, size = 0x4, scoped, tag = 'scoped memory for hp2m_forward.2']
    #allocation4 [shape = 'u8[1024]{0}', space=vmem, size = 0x400, scoped, tag = 'input window, operand 2, single buffered']
    #allocation5 [shape = 's32[1]{0}', space=sflag, size = 0x4, scoped, tag = 'scoped memory for hp2m_forward.2']
    #allocation6 [shape = 'u8[65536]{0}', space=vmem, size = 0x10000, scoped, tag = 'input window, operand 3, single buffered']
    #allocation7 [shape = 'u8[512]{0}', space=vmem, size = 0x400, scoped, tag = 'input window, operand 4, single buffered']
    #allocation8 [shape = 's32[1]{0}', space=sflag, size = 0x4, scoped, tag = 'scoped memory for hp2m_forward.2']
    %10 = vsyncpa [#allocation3], 0
    %11 = vsyncpa [#allocation5], 0
    %12 = vsyncpa [#allocation8], 0
    // Predicated region
    $region2: #{hp2m_forward.2} parent=1 // pred_check
      _
    $region3: #{hp2m_forward.2} parent=1 // pred_check_branch
      %14 = sbr.rel (0) target = $region5
    $region4: #{hp2m_forward.2} parent=1 // pred_region
      _
    $region5: #{hp2m_forward.2} parent=1 // pred_fallthru
      _
    // Predicated region
    $region6: #{hp2m_forward.2} parent=1 // pred_check
      _
    $region7: #{hp2m_forward.2} parent=1 // pred_check_branch
      %16 = sbr.rel (0) target = $region9
    $region8: #{hp2m_forward.2} parent=1 // pred_region
      %18 = vsyncadd [#allocation3], 0
      %s19 = sshll.u32 %s1, 4
      %s20 = int_to_ptr.hbm [resolvable:$true] %s19
      %s21 = sshll.u32 [#allocation2], 4
      %s22 = int_to_ptr.vmem [resolvable:$true] %s21
      %27 = dma.hbm_to_vmem [thread:$0]  %s20, 1024, %s22, [#allocation3], 128, 128, 8
    $region9: #{hp2m_forward.2} parent=1 // pred_fallthru
      _
    // Predicated region
    $region10: #{hp2m_forward.2} parent=1 // pred_check
      _
    $region11: #{hp2m_forward.2} parent=1 // pred_check_branch
      %29 = sbr.rel (0) target = $region13
    $region12: #{hp2m_forward.2} parent=1 // pred_region
      %31 = vsyncadd [#allocation5], 0
      %s33 = sshll.u32 %s2, 4
      %s34 = int_to_ptr.hbm [resolvable:$true] %s33
      %s35 = sshll.u32 [#allocation4], 4
      %s36 = int_to_ptr.vmem [resolvable:$true] %s35
      %38 = dma.hbm_to_vmem [thread:$0]  %s34, 32, %s36, [#allocation5]
    $region13: #{hp2m_forward.2} parent=1 // pred_fallthru
      _
    // Predicated region
    $region14: #{hp2m_forward.2} parent=1 // pred_check
      _
    $region15: #{hp2m_forward.2} parent=1 // pred_check_branch
      %40 = sbr.rel (0) target = $region17
    $region16: #{hp2m_forward.2} parent=1 // pred_region
      %42 = vsyncadd [#allocation5], 0
      %s43 = sshll.u32 %s3, 4
      %s44 = int_to_ptr.hbm [resolvable:$true] %s43
      %s45 = sshll.u32 [#allocation6], 4
      %s46 = int_to_ptr.vmem [resolvable:$true] %s45
      %51 = dma.hbm_to_vmem [thread:$0]  %s44, 2048, %s46, [#allocation5], 64, 64, 4
    $region17: #{hp2m_forward.2} parent=1 // pred_fallthru
      _
    // Predicated region
    $region18: #{hp2m_forward.2} parent=1 // pred_check
      _
    $region19: #{hp2m_forward.2} parent=1 // pred_check_branch
      %53 = sbr.rel (0) target = $region21
    $region20: #{hp2m_forward.2} parent=1 // pred_region
      %55 = vsyncadd [#allocation8], 0
      %s57 = sshll.u32 %s4, 4
      %s58 = int_to_ptr.hbm [resolvable:$true] %s57
      %s59 = sshll.u32 [#allocation7], 4
      %s60 = int_to_ptr.vmem [resolvable:$true] %s59
      %62 = dma.hbm_to_vmem [thread:$0]  %s58, 16, %s60, [#allocation8]
    $region21: #{hp2m_forward.2} parent=1 // pred_fallthru
      _
    // Predicated region
    $region22: #{hp2m_forward.2} parent=1 // pred_check
      _
    $region23: #{hp2m_forward.2} parent=1 // pred_check_branch
      %64 = sbr.rel (0) target = $region25
    $region24: #{hp2m_forward.2} parent=1 // pred_region
      %66 = dma.done [#allocation3], 1024
    $region25: #{hp2m_forward.2} parent=1 // pred_fallthru
      _
    // Predicated region
    $region26: #{hp2m_forward.2} parent=1 // pred_check
      _
    $region27: #{hp2m_forward.2} parent=1 // pred_check_branch
      %68 = sbr.rel (0) target = $region29
    $region28: #{hp2m_forward.2} parent=1 // pred_region
      %70 = dma.done [#allocation5], 32
    $region29: #{hp2m_forward.2} parent=1 // pred_fallthru
      _
    // Predicated region
    $region30: #{hp2m_forward.2} parent=1 // pred_check
      _
    $region31: #{hp2m_forward.2} parent=1 // pred_check_branch
      %72 = sbr.rel (0) target = $region33
    $region32: #{hp2m_forward.2} parent=1 // pred_region
      %74 = dma.done [#allocation5], 2048
    $region33: #{hp2m_forward.2} parent=1 // pred_fallthru
      _
    // Predicated region
    $region34: #{hp2m_forward.2} parent=1 // pred_check
      _
    $region35: #{hp2m_forward.2} parent=1 // pred_check_branch
      %76 = sbr.rel (0) target = $region37
    $region36: #{hp2m_forward.2} parent=1 // pred_region
      %78 = dma.done [#allocation8], 16
    $region37: #{hp2m_forward.2} parent=1 // pred_fallthru
      _
    %v80 = vld [vmem:[%s0] sm:$0x1]
    %v81 = vld [vmem:[#allocation2] sm:$0xff]
    %v82 = vld [vmem:[#allocation2 + $0x8] sm:$0xff]
    %v83 = vld [vmem:[#allocation2 + $0x10] sm:$0xff]
    %v84 = vld [vmem:[#allocation2 + $0x18] sm:$0xff]
    %v85 = vld [vmem:[#allocation2 + $0x20] sm:$0xff]
    %v86 = vld [vmem:[#allocation2 + $0x28] sm:$0xff]
    %v87 = vld [vmem:[#allocation2 + $0x30] sm:$0xff]
    %v88 = vld [vmem:[#allocation2 + $0x38] sm:$0x33]
    %v89 = vld [vmem:[#allocation4] sm:$0x3]
    %v91 = vperm.slane %v89, 0
    %v92 = vperm.slane %v89, 1
    %v103 = vunpack.c.l.b16 %v81
    %v104 = vunpack.c.h.b16 %v81
    %v105 = vunpack.c.l.b16 %v82
    %v106 = vunpack.c.h.b16 %v82
    %v107 = vunpack.c.l.b16 %v83
    %v108 = vunpack.c.h.b16 %v83
    %v109 = vunpack.c.l.b16 %v84
    %v110 = vunpack.c.h.b16 %v84
    %v111 = vunpack.c.l.b16 %v85
    %v112 = vunpack.c.h.b16 %v85
    %v113 = vunpack.c.l.b16 %v86
    %v114 = vunpack.c.h.b16 %v86
    %v115 = vunpack.c.l.b16 %v87
    %v116 = vunpack.c.h.b16 %v87
    %v117 = vunpack.c.l.b16 %v88
    %v118 = vunpack.c.h.b16 %v88
    %v119 = vpack.c.b16 %v105, %v103
    %v120 = vpack.c.b16 %v106, %v104
    %v121 = vpack.c.b16 %v109, %v107
    %v122 = vpack.c.b16 %v110, %v108
    %v123 = vpack.c.b16 %v113, %v111
    %v124 = vpack.c.b16 %v114, %v112
    %v125 = vpack.c.b16 %v117, %v115
    %v126 = vpack.c.b16 %v118, %v116
    %vm133 = vcmask 490496
    %v135 = vsel %vm133, %v80, 0
    %vm137 = vcmask 1045504
    %v139 = vsel %vm137, %v125, 0
    %v142 = vsel %vm137, %v126, 0
    %144 = vmatpush.bf16.msra.mxu0 0
    %145 = vmatpush.bf16.msra.mxu0 0
    %146 = vmatpush.bf16.msra.mxu0 0
    %147 = vmatpush.bf16.msra.mxu0 0
    %148 = vmatpush.bf16.msra.mxu0 %v139
    %149 = vmatpush.bf16.msra.mxu0 %v123
    %150 = vmatpush.bf16.msra.mxu0 %v121
    %151 = vmatpush.bf16.msra.mxu0 %v119
    %152 = vmatmul.bf16.gmra.mxu0 %v135
    %v153 = vpop.f32.mrf.mxu0
    %v154 = vadd.f32 %v91, %v153
    %v155 = vpop.f32.mrf.mxu0
    %156 = vdwg.mxu0
    %157 = vmatpush.bf16.msra.mxu0 0
    %158 = vmatpush.bf16.msra.mxu0 0
    %159 = vmatpush.bf16.msra.mxu0 0
    %160 = vmatpush.bf16.msra.mxu0 0
    %161 = vmatpush.bf16.msra.mxu0 %v142
    %162 = vmatpush.bf16.msra.mxu0 %v124
    %163 = vmatpush.bf16.msra.mxu0 %v122
    %164 = vmatpush.bf16.msra.mxu0 %v120
    %165 = vmatmul.bf16.gmra.mxu0 %v135
    %v166 = vpop.f32.mrf.mxu0
    %v167 = vadd.f32 %v92, %v166
    %v168 = vpop.f32.mrf.mxu0
    %169 = vdwg.mxu0
    %v170 = vmax.f32 %v154, 0.0
    %v171 = vmax.f32 %v167, 0.0
    %v172 = vpack.c.bf16 %v170, %v170
    %v173 = vpack.c.bf16 %v171, %v171
    %v174 = vld [vmem:[#allocation6] sm:$0xf]
    %v175 = vld [vmem:[#allocation6 + $0x4] sm:$0xf]
    %v176 = vld [vmem:[#allocation6 + $0x8] sm:$0xf]
    %v177 = vld [vmem:[#allocation6 + $0xc] sm:$0xf]
    %v178 = vld [vmem:[#allocation6 + $0x10] sm:$0xf]
    %v179 = vld [vmem:[#allocation6 + $0x14] sm:$0xf]
    %v180 = vld [vmem:[#allocation6 + $0x18] sm:$0xf]
    %v181 = vld [vmem:[#allocation6 + $0x1c] sm:$0xf]
    %v182 = vld [vmem:[#allocation6 + $0x20] sm:$0xf]
    %v183 = vld [vmem:[#allocation6 + $0x24] sm:$0xf]
    %v184 = vld [vmem:[#allocation6 + $0x28] sm:$0xf]
    %v185 = vld [vmem:[#allocation6 + $0x2c] sm:$0xf]
    %v186 = vld [vmem:[#allocation6 + $0x30] sm:$0xf]
    %v187 = vld [vmem:[#allocation6 + $0x34] sm:$0xf]
    %v188 = vld [vmem:[#allocation6 + $0x38] sm:$0xf]
    %v189 = vld [vmem:[#allocation6 + $0x3c] sm:$0xf]
    %v190 = vld [vmem:[#allocation6 + $0x40] sm:$0xf]
    %v191 = vld [vmem:[#allocation6 + $0x44] sm:$0xf]
    %v192 = vld [vmem:[#allocation6 + $0x48] sm:$0xf]
    %v193 = vld [vmem:[#allocation6 + $0x4c] sm:$0xf]
    %v194 = vld [vmem:[#allocation6 + $0x50] sm:$0xf]
    %v195 = vld [vmem:[#allocation6 + $0x54] sm:$0xf]
    %v196 = vld [vmem:[#allocation6 + $0x58] sm:$0xf]
    %v197 = vld [vmem:[#allocation6 + $0x5c] sm:$0xf]
    %v198 = vld [vmem:[#allocation6 + $0x60] sm:$0xf]
    %v199 = vld [vmem:[#allocation6 + $0x64] sm:$0xf]
    %v200 = vld [vmem:[#allocation6 + $0x68] sm:$0xf]
    %v201 = vld [vmem:[#allocation6 + $0x6c] sm:$0xf]
    %v202 = vld [vmem:[#allocation6 + $0x70] sm:$0xf]
    %v203 = vld [vmem:[#allocation6 + $0x74] sm:$0xf]
    %v204 = vld [vmem:[#allocation6 + $0x78] sm:$0xf]
    %v205 = vld [vmem:[#allocation6 + $0x7c] sm:$0xf]
    %v206 = vld [vmem:[#allocation7] sm:$0x1]
    %v208 = vperm.slane %v206, 0
    %v242 = vunpack.c.l.b16 %v174
    %v243 = vunpack.c.l.b16 %v175
    %v244 = vunpack.c.l.b16 %v176
    %v245 = vunpack.c.l.b16 %v177
    %v246 = vunpack.c.l.b16 %v178
    %v247 = vunpack.c.l.b16 %v179
    %v248 = vunpack.c.l.b16 %v180
    %v249 = vunpack.c.l.b16 %v181
    %v250 = vunpack.c.l.b16 %v182
    %v251 = vunpack.c.l.b16 %v183
    %v252 = vunpack.c.l.b16 %v184
    %v253 = vunpack.c.l.b16 %v185
    %v254 = vunpack.c.l.b16 %v186
    %v255 = vunpack.c.l.b16 %v187
    %v256 = vunpack.c.l.b16 %v188
    %v257 = vunpack.c.l.b16 %v189
    %v258 = vunpack.c.l.b16 %v190
    %v259 = vunpack.c.l.b16 %v191
    %v260 = vunpack.c.l.b16 %v192
    %v261 = vunpack.c.l.b16 %v193
    %v262 = vunpack.c.l.b16 %v194
    %v263 = vunpack.c.l.b16 %v195
    %v264 = vunpack.c.l.b16 %v196
    %v265 = vunpack.c.l.b16 %v197
    %v266 = vunpack.c.l.b16 %v198
    %v267 = vunpack.c.l.b16 %v199
    %v268 = vunpack.c.l.b16 %v200
    %v269 = vunpack.c.l.b16 %v201
    %v270 = vunpack.c.l.b16 %v202
    %v271 = vunpack.c.l.b16 %v203
    %v272 = vunpack.c.l.b16 %v204
    %v273 = vunpack.c.l.b16 %v205
    %v274 = vpack.c.b16 %v243, %v242
    %v275 = vpack.c.b16 %v245, %v244
    %v276 = vpack.c.b16 %v247, %v246
    %v277 = vpack.c.b16 %v249, %v248
    %v278 = vpack.c.b16 %v251, %v250
    %v279 = vpack.c.b16 %v253, %v252
    %v280 = vpack.c.b16 %v255, %v254
    %v281 = vpack.c.b16 %v257, %v256
    %v282 = vpack.c.b16 %v259, %v258
    %v283 = vpack.c.b16 %v261, %v260
    %v284 = vpack.c.b16 %v263, %v262
    %v285 = vpack.c.b16 %v265, %v264
    %v286 = vpack.c.b16 %v267, %v266
    %v287 = vpack.c.b16 %v269, %v268
    %v288 = vpack.c.b16 %v271, %v270
    %v289 = vpack.c.b16 %v273, %v272
    %306 = vmatpush.bf16.msra.mxu0 %v281
    %307 = vmatpush.bf16.msra.mxu0 %v280
    %308 = vmatpush.bf16.msra.mxu0 %v279
    %309 = vmatpush.bf16.msra.mxu0 %v278
    %310 = vmatpush.bf16.msra.mxu0 %v277
    %311 = vmatpush.bf16.msra.mxu0 %v276
    %312 = vmatpush.bf16.msra.mxu0 %v275
    %313 = vmatpush.bf16.msra.mxu0 %v274
    %314 = vmatmul.bf16.gmra.mxu0 %v172
    %v315 = vpop.f32.mrf.mxu0
    %v316 = vadd.f32 %v208, %v315
    %v317 = vpop.f32.mrf.mxu0
    %318 = vdwg.mxu0
    %319 = vmatpush.bf16.msra.mxu0 %v289
    %320 = vmatpush.bf16.msra.mxu0 %v288
    %321 = vmatpush.bf16.msra.mxu0 %v287
    %322 = vmatpush.bf16.msra.mxu0 %v286
    %323 = vmatpush.bf16.msra.mxu0 %v285
    %324 = vmatpush.bf16.msra.mxu0 %v284
    %325 = vmatpush.bf16.msra.mxu0 %v283
    %326 = vmatpush.bf16.msra.mxu0 %v282
    %327 = vmatmul.bf16.gmra.mxu0 %v173
    %v328 = vpop.f32.mrf.mxu0
    %v329 = vadd.f32 %v316, %v328
    %v330 = vpop.f32.mrf.mxu0
    %331 = vdwg.mxu0
    %v332 = vmax.f32 %v329, 0.0
    %v333 = vpack.c.bf16 %v332, %v332
    %334 = vst [vmem:[%s5] sm:$0x1] %v333
    // Predicated region
    $region38: #{hp2m_forward.2} parent=1 // pred_check
      _
    $region39: #{hp2m_forward.2} parent=1 // pred_check_branch
      %336 = sbr.rel (0) target = $region41
    $region40: #{hp2m_forward.2} parent=1 // pred_region
      _
    $region41: #{hp2m_forward.2} parent=1 // pred_fallthru
      _
    // Predicated region
    $region42: #{hp2m_forward.2} parent=1 // pred_check
      _
    $region43: #{hp2m_forward.2} parent=1 // pred_check_branch
      %338 = sbr.rel (0) target = $region45
    $region44: #{hp2m_forward.2} parent=1 // pred_region
      _
    $region45: #{hp2m_forward.2} parent=1 // pred_fallthru
      _
    %339 = vsyncpa [#allocation3], 1
    %340 = vsyncpa [#allocation5], 1
    %341 = vsyncpa [#allocation8], 1

// kernel: hp2m_forward.3
$region0: #{hp2m_forward.3}
  #allocation0 [shape = 'u32[]', space=smem, size = 0x4, offset = 0x4, fixed_abs, tag = 'smem constant byte address 0x4 - core index']
  #allocation1 [shape = 'u32[72,128]{1,0:T(1,128)}', space=vmem, size = 0x9000, scoped, tag = 'internal scratch']
  %s0 = inlined_call_operand.vmem [shape: bf16[20,2,140], index: 0, kind: input, shape index: {}]
  %s1 = inlined_call_operand.vmem [shape: bf16[2,128], index: 1, kind: input, shape index: {}]
  %s2 = inlined_call_operand.hbm [shape: bf16[140,768], index: 2, kind: input, shape index: {}]
  %s3 = inlined_call_operand.hbm [shape: bf16[128,768], index: 3, kind: input, shape index: {}]
  %s4 = inlined_call_operand.hbm [shape: f32[1,768], index: 4, kind: input, shape index: {}]
  %s5 = inlined_call_operand.hbm [shape: bf16[3,256,256], index: 5, kind: input, shape index: {}]
  %s6 = inlined_call_operand.hbm [shape: f32[3,1,256], index: 6, kind: input, shape index: {}]
  %s7 = inlined_call_operand.hbm [shape: bf16[3,256,128], index: 7, kind: input, shape index: {}]
  %s8 = inlined_call_operand.hbm [shape: f32[3,1,128], index: 8, kind: input, shape index: {}]
  %s9 = inlined_call_operand.vmem [shape: bf16[2,7680], index: 9, kind: output, shape index: {}]
  %s10 = sld [smem:[#allocation0]]
  $region97: #{hp2m_forward.3} parent=0
    _
  %s12 = ssub.s32 1, %s10
  %s13 = scalar_select 0, %s12, %s10
  $region1: #{hp2m_forward.3} parent=0
    #allocation2 [shape = 'u8[221184]{0}', space=vmem, size = 0x36000, scoped, tag = 'input window, operand 2, single buffered']
    #allocation3 [shape = 's32[2]{0}', space=sflag, size = 0x8, scoped, tag = 'scoped memory for hp2m_forward.3']
    #allocation4 [shape = 'u8[196608]{0}', space=vmem, size = 0x30000, scoped, tag = 'input window, operand 3, single buffered']
    #allocation5 [shape = 's32[1]{0}', space=sflag, size = 0x4, scoped, tag = 'scoped memory for hp2m_forward.3']
    #allocation6 [shape = 'u8[3072]{0}', space=vmem, size = 0xc00, scoped, tag = 'input window, operand 4, single buffered']
    #allocation7 [shape = 'u8[393216]{0}', space=vmem, size = 0x60000, scoped, tag = 'input window, operand 5, single buffered']
    #allocation8 [shape = 's32[1]{0}', space=sflag, size = 0x4, scoped, tag = 'scoped memory for hp2m_forward.3']
    #allocation9 [shape = 'u8[3072]{0}', space=vmem, size = 0xc00, scoped, tag = 'input window, operand 6, single buffered']
    #allocation10 [shape = 'u8[196608]{0}', space=vmem, size = 0x30000, scoped, tag = 'input window, operand 7, single buffered']
    #allocation11 [shape = 's32[1]{0}', space=sflag, size = 0x4, scoped, tag = 'scoped memory for hp2m_forward.3']
    #allocation12 [shape = 'u8[1536]{0}', space=vmem, size = 0x800, scoped, tag = 'input window, operand 8, single buffered']
    %14 = vsyncpa [#allocation3], 0
    %15 = vsyncpa [#allocation5], 0
    %16 = vsyncpa [#allocation8], 0
    %17 = vsyncpa [#allocation11], 0
    loop: start=0, step=1, limit=22
    $region2: #{hp2m_forward.3} parent=1 // loop_pre_header
      _
    $region3: #{hp2m_forward.3} parent=1 // loop_header
      %s19 = sphi 0, %s23
      %p20 = scmp.ge.s32.totalorder %s19, 22
      %s26 = sphi 0, %s38
      %s27 = sphi 0, %s34
      %s28 = sphi 0, %s26
      %s29 = sphi 0, %s27
      %s30 = sphi 0, %s28
      %s31 = sphi 0, %s29
      %s43 = sphi 0, %s45
      %s46 = sphi 0, %s43
      %s47 = sphi 0, %s46
      %s63 = sphi 0, %s47
      %s69 = sphi 0, %s71
      %s72 = sphi 0, %s69
      %s73 = sphi 0, %s72
      %s89 = sphi 0, %s73
      %s93 = sphi 0, %s93
      %s95 = sphi 0, %s93
      %s96 = sphi 0, %s95
      %s110 = sphi 0, %s96
      %s114 = sphi 0, %s114
      %s116 = sphi 0, %s114
      %s117 = sphi 0, %s116
      %s131 = sphi 0, %s117
      %s135 = sphi 0, %s135
      %s137 = sphi 0, %s135
      %s138 = sphi 0, %s137
      %s152 = sphi 0, %s138
      %s156 = sphi 0, %s156
      %s158 = sphi 0, %s156
      %s159 = sphi 0, %s158
      %s173 = sphi 0, %s159
      %s177 = sphi 0, %s177
      %s179 = sphi 0, %s177
      %s180 = sphi 0, %s179
      %s194 = sphi 0, %s180
      %s198 = sphi 0, %s198
      %s200 = sphi 0, %s198
      %s201 = sphi 0, %s200
      %s215 = sphi 0, %s201
      %s219 = sphi 0, %s219
      %s221 = sphi 0, %s219
      %s222 = sphi 0, %s221
      %s236 = sphi 0, %s222
      %s244 = sphi 0, %s246
      %s247 = sphi 0, %s244
      %s248 = sphi 0, %s247
      %s264 = sphi 0, %s248
    $region4: #{hp2m_forward.3} parent=1 // loop_header_branch
      %22 = sbr.rel (%p20) target = $region8
    $region5: #{hp2m_forward.3} parent=1 // loop_body
      %s24 = ssub.s32 %s19, 1
      %s25 = ssub.s32 %s19, 2
      %s32 = sadd.s32 1, %s27
      %p33 = scmp.ge.s32.totalorder %s32, 20
      %s34 = scalar_select %p33, 0, %s32
      %s35 = sadd.s32 1, %s26
      %s36 = scalar_select %p33, %s35, %s26
      %p37 = scmp.ge.s32.totalorder %s36, 1
      %s38 = scalar_select %p37, 0, %s36
      %s39 = ssub.s32 %s27, %s34
      %s40 = ssub.s32 %s26, %s38
      %s41 = sor.u32 %s39, %s40
      %p42 = scmp.eq.s32.totalorder %s41, 0
      %s44 = sadd.s32 %s43, 1
      %s45 = scalar_select %p42, %s43, %s44
      %p48 = pneg %p42
      %p49 = scmp.eq.s32.totalorder %s19, 19
      %p50 = por %p48, %p49
      %p51 = scmp.ne.s32.totalorder %s43, %s46
      %p52 = scmp.eq.s32.totalorder %s19, 0
      %p53 = por %p51, %p52
      %p54 = scmp.ne.s32.totalorder %s43, %s46
      %p55 = scmp.eq.s32.totalorder %s24, 19
      %p56 = por %p54, %p55
      %p57 = scmp.ne.s32.totalorder %s46, %s47
      %p58 = scmp.eq.s32.totalorder %s24, 0
      %p59 = por %p57, %p58
      %p60 = scmp.ne.s32.totalorder %s46, %s47
      %p61 = scmp.eq.s32.totalorder %s25, 19
      %p62 = por %p60, %p61
      %p64 = scmp.ne.s32.totalorder %s47, %s63
      %p65 = scmp.eq.s32.totalorder %s25, 0
      %p66 = por %p64, %p65
      %s67 = ssub.s32 %s26, %s38
      %p68 = scmp.eq.s32.totalorder %s67, 0
      %s70 = sadd.s32 %s69, 1
      %s71 = scalar_select %p68, %s69, %s70
      %p74 = pneg %p68
      %p75 = scmp.eq.s32.totalorder %s19, 19
      %p76 = por %p74, %p75
      %p77 = scmp.ne.s32.totalorder %s69, %s72
      %p78 = scmp.eq.s32.totalorder %s19, 0
      %p79 = por %p77, %p78
      %p80 = scmp.ne.s32.totalorder %s69, %s72
      %p81 = scmp.eq.s32.totalorder %s24, 19
      %p82 = por %p80, %p81
      %p83 = scmp.ne.s32.totalorder %s72, %s73
      %p84 = scmp.eq.s32.totalorder %s24, 0
      %p85 = por %p83, %p84
      %p86 = scmp.ne.s32.totalorder %s72, %s73
      %p87 = scmp.eq.s32.totalorder %s25, 19
      %p88 = por %p86, %p87
      %p90 = scmp.ne.s32.totalorder %s73, %s89
      %p91 = scmp.eq.s32.totalorder %s25, 0
      %p92 = por %p90, %p91
      %s94 = sadd.s32 %s93, 1
      %p97 = scmp.eq.s32.totalorder %s19, 19
      %p98 = scmp.ne.s32.totalorder %s93, %s95
      %p99 = scmp.eq.s32.totalorder %s19, 0
      %p100 = por %p98, %p99
      %p101 = scmp.ne.s32.totalorder %s93, %s95
      %p102 = scmp.eq.s32.totalorder %s24, 19
      %p103 = por %p101, %p102
      %p104 = scmp.ne.s32.totalorder %s95, %s96
      %p105 = scmp.eq.s32.totalorder %s24, 0
      %p106 = por %p104, %p105
      %p107 = scmp.ne.s32.totalorder %s95, %s96
      %p108 = scmp.eq.s32.totalorder %s25, 19
      %p109 = por %p107, %p108
      %p111 = scmp.ne.s32.totalorder %s96, %s110
      %p112 = scmp.eq.s32.totalorder %s25, 0
      %p113 = por %p111, %p112
      %s115 = sadd.s32 %s114, 1
      %p118 = scmp.eq.s32.totalorder %s19, 19
      %p119 = scmp.ne.s32.totalorder %s114, %s116
      %p120 = scmp.eq.s32.totalorder %s19, 0
      %p121 = por %p119, %p120
      %p122 = scmp.ne.s32.totalorder %s114, %s116
      %p123 = scmp.eq.s32.totalorder %s24, 19
      %p124 = por %p122, %p123
      %p125 = scmp.ne.s32.totalorder %s116, %s117
      %p126 = scmp.eq.s32.totalorder %s24, 0
      %p127 = por %p125, %p126
      %p128 = scmp.ne.s32.totalorder %s116, %s117
      %p129 = scmp.eq.s32.totalorder %s25, 19
      %p130 = por %p128, %p129
      %p132 = scmp.ne.s32.totalorder %s117, %s131
      %p133 = scmp.eq.s32.totalorder %s25, 0
      %p134 = por %p132, %p133
      %s136 = sadd.s32 %s135, 1
      %p139 = scmp.eq.s32.totalorder %s19, 19
      %p140 = scmp.ne.s32.totalorder %s135, %s137
      %p141 = scmp.eq.s32.totalorder %s19, 0
      %p142 = por %p140, %p141
      %p143 = scmp.ne.s32.totalorder %s135, %s137
      %p144 = scmp.eq.s32.totalorder %s24, 19
      %p145 = por %p143, %p144
      %p146 = scmp.ne.s32.totalorder %s137, %s138
      %p147 = scmp.eq.s32.totalorder %s24, 0
      %p148 = por %p146, %p147
      %p149 = scmp.ne.s32.totalorder %s137, %s138
      %p150 = scmp.eq.s32.totalorder %s25, 19
      %p151 = por %p149, %p150
      %p153 = scmp.ne.s32.totalorder %s138, %s152
      %p154 = scmp.eq.s32.totalorder %s25, 0
      %p155 = por %p153, %p154
      %s157 = sadd.s32 %s156, 1
      %p160 = scmp.eq.s32.totalorder %s19, 19
      %p161 = scmp.ne.s32.totalorder %s156, %s158
      %p162 = scmp.eq.s32.totalorder %s19, 0
      %p163 = por %p161, %p162
      %p164 = scmp.ne.s32.totalorder %s156, %s158
      %p165 = scmp.eq.s32.totalorder %s24, 19
      %p166 = por %p164, %p165
      %p167 = scmp.ne.s32.totalorder %s158, %s159
      %p168 = scmp.eq.s32.totalorder %s24, 0
      %p169 = por %p167, %p168
      %p170 = scmp.ne.s32.totalorder %s158, %s159
      %p171 = scmp.eq.s32.totalorder %s25, 19
      %p172 = por %p170, %p171
      %p174 = scmp.ne.s32.totalorder %s159, %s173
      %p175 = scmp.eq.s32.totalorder %s25, 0
      %p176 = por %p174, %p175
      %s178 = sadd.s32 %s177, 1
      %p181 = scmp.eq.s32.totalorder %s19, 19
      %p182 = scmp.ne.s32.totalorder %s177, %s179
      %p183 = scmp.eq.s32.totalorder %s19, 0
      %p184 = por %p182, %p183
      %p185 = scmp.ne.s32.totalorder %s177, %s179
      %p186 = scmp.eq.s32.totalorder %s24, 19
      %p187 = por %p185, %p186
      %p188 = scmp.ne.s32.totalorder %s179, %s180
      %p189 = scmp.eq.s32.totalorder %s24, 0
      %p190 = por %p188, %p189
      %p191 = scmp.ne.s32.totalorder %s179, %s180
      %p192 = scmp.eq.s32.totalorder %s25, 19
      %p193 = por %p191, %p192
      %p195 = scmp.ne.s32.totalorder %s180, %s194
      %p196 = scmp.eq.s32.totalorder %s25, 0
      %p197 = por %p195, %p196
      %s199 = sadd.s32 %s198, 1
      %p202 = scmp.eq.s32.totalorder %s19, 19
      %p203 = scmp.ne.s32.totalorder %s198, %s200
      %p204 = scmp.eq.s32.totalorder %s19, 0
      %p205 = por %p203, %p204
      %p206 = scmp.ne.s32.totalorder %s198, %s200
      %p207 = scmp.eq.s32.totalorder %s24, 19
      %p208 = por %p206, %p207
      %p209 = scmp.ne.s32.totalorder %s200, %s201
      %p210 = scmp.eq.s32.totalorder %s24, 0
      %p211 = por %p209, %p210
      %p212 = scmp.ne.s32.totalorder %s200, %s201
      %p213 = scmp.eq.s32.totalorder %s25, 19
      %p214 = por %p212, %p213
      %p216 = scmp.ne.s32.totalorder %s201, %s215
      %p217 = scmp.eq.s32.totalorder %s25, 0
      %p218 = por %p216, %p217
      %s220 = sadd.s32 %s219, 1
      %p223 = scmp.eq.s32.totalorder %s19, 19
      %p224 = scmp.ne.s32.totalorder %s219, %s221
      %p225 = scmp.eq.s32.totalorder %s19, 0
      %p226 = por %p224, %p225
      %p227 = scmp.ne.s32.totalorder %s219, %s221
      %p228 = scmp.eq.s32.totalorder %s24, 19
      %p229 = por %p227, %p228
      %p230 = scmp.ne.s32.totalorder %s221, %s222
      %p231 = scmp.eq.s32.totalorder %s24, 0
      %p232 = por %p230, %p231
      %p233 = scmp.ne.s32.totalorder %s221, %s222
      %p234 = scmp.eq.s32.totalorder %s25, 19
      %p235 = por %p233, %p234
      %p237 = scmp.ne.s32.totalorder %s222, %s236
      %p238 = scmp.eq.s32.totalorder %s25, 0
      %p239 = por %p237, %p238
      %s240 = ssub.s32 %s26, %s38
      %s241 = ssub.s32 %s27, %s34
      %s242 = sor.u32 %s240, %s241
      %p243 = scmp.eq.s32.totalorder %s242, 0
      %s245 = sadd.s32 %s244, 1
      %s246 = scalar_select %p243, %s244, %s245
      %p249 = pneg %p243
      %p250 = scmp.eq.s32.totalorder %s19, 19
      %p251 = por %p249, %p250
      %p252 = scmp.ne.s32.totalorder %s244, %s247
      %p253 = scmp.eq.s32.totalorder %s19, 0
      %p254 = por %p252, %p253
      %p255 = scmp.ne.s32.totalorder %s244, %s247
      %p256 = scmp.eq.s32.totalorder %s24, 19
      %p257 = por %p255, %p256
      %p258 = scmp.ne.s32.totalorder %s247, %s248
      %p259 = scmp.eq.s32.totalorder %s24, 0
      %p260 = por %p258, %p259
      %p261 = scmp.ne.s32.totalorder %s247, %s248
      %p262 = scmp.eq.s32.totalorder %s25, 19
      %p263 = por %p261, %p262
      %p265 = scmp.ne.s32.totalorder %s248, %s264
      %p266 = scmp.eq.s32.totalorder %s25, 0
      %p267 = por %p265, %p266
      %p268 = scmp.le.s32.totalorder 1, %s19
      %p269 = scmp.lt.s32.totalorder %s19, 21
      %p270 = pnand %p268, %p269
      %p271 = pneg %p270
      // Predicated region
      $region9: #{hp2m_forward.3} parent=5 // pred_check
        _
      $region10: #{hp2m_forward.3} parent=5 // pred_check_branch
        %273 = sbr.rel (%p270) target = $region12
      $region11: #{hp2m_forward.3} parent=5 // pred_region
        %s274 = ssub.s32 %s19, 1
        // Predicated region
        $region13: #{hp2m_forward.3} parent=11 // pred_check
          %p275 = pneg %p85
        $region14: #{hp2m_forward.3} parent=11 // pred_check_branch
          %277 = sbr.rel (%p275) target = $region16
        $region15: #{hp2m_forward.3} parent=11 // pred_region
          %p278 = scmp.lt.s32.totalorder %s28, 0
          %s279 = scalar_select %p278, %s28, 0
          %s280 = scalar_lea.vmem %s1, %s279
        $region16: #{hp2m_forward.3} parent=11 // pred_fallthru
          _
        // Predicated region
        $region17: #{hp2m_forward.3} parent=11 // pred_check
          %p281 = pneg %p106
        $region18: #{hp2m_forward.3} parent=11 // pred_check_branch
          %283 = sbr.rel (%p281) target = $region20
        $region19: #{hp2m_forward.3} parent=11 // pred_region
          %285 = vsyncadd [#allocation3], 0
          %s286 = sshll.u32 %s2, 4
          %s287 = int_to_ptr.hbm [resolvable:$true] %s286
          %s288 = sshll.u32 [#allocation2], 4
          %s289 = int_to_ptr.vmem [resolvable:$true] %s288
          %294 = dma.hbm_to_vmem [thread:$0]  %s287, 6912, %s289, [#allocation3], 384, 384, 24
        $region20: #{hp2m_forward.3} parent=11 // pred_fallthru
          _
        // Predicated region
        $region21: #{hp2m_forward.3} parent=11 // pred_check
          %p295 = pneg %p127
        $region22: #{hp2m_forward.3} parent=11 // pred_check_branch
          %297 = sbr.rel (%p295) target = $region24
        $region23: #{hp2m_forward.3} parent=11 // pred_region
          %299 = vsyncadd [#allocation5], 0
          %s300 = sshll.u32 %s3, 4
          %s301 = int_to_ptr.hbm [resolvable:$true] %s300
          %s302 = sshll.u32 [#allocation4], 4
          %s303 = int_to_ptr.vmem [resolvable:$true] %s302
          %308 = dma.hbm_to_vmem [thread:$0]  %s301, 6144, %s303, [#allocation5], 384, 384, 24
        $region24: #{hp2m_forward.3} parent=11 // pred_fallthru
          _
        // Predicated region
        $region25: #{hp2m_forward.3} parent=11 // pred_check
          %p309 = pneg %p148
        $region26: #{hp2m_forward.3} parent=11 // pred_check_branch
          %311 = sbr.rel (%p309) target = $region28
        $region27: #{hp2m_forward.3} parent=11 // pred_region
          %313 = vsyncadd [#allocation5], 0
          %s315 = sshll.u32 %s4, 4
          %s316 = int_to_ptr.hbm [resolvable:$true] %s315
          %s317 = sshll.u32 [#allocation6], 4
          %s318 = int_to_ptr.vmem [resolvable:$true] %s317
          %320 = dma.hbm_to_vmem [thread:$0]  %s316, 96, %s318, [#allocation5]
        $region28: #{hp2m_forward.3} parent=11 // pred_fallthru
          _
        // Predicated region
        $region29: #{hp2m_forward.3} parent=11 // pred_check
          %p321 = pneg %p169
        $region30: #{hp2m_forward.3} parent=11 // pred_check_branch
          %323 = sbr.rel (%p321) target = $region32
        $region31: #{hp2m_forward.3} parent=11 // pred_region
          %325 = vsyncadd [#allocation8], 0
          %s326 = sshll.u32 %s5, 4
          %s327 = int_to_ptr.hbm [resolvable:$true] %s326
          %s328 = sshll.u32 [#allocation7], 4
          %s329 = int_to_ptr.vmem [resolvable:$true] %s328
          %334 = dma.hbm_to_vmem [thread:$0]  %s327, 12288, %s329, [#allocation8], 128, 128, 8
        $region32: #{hp2m_forward.3} parent=11 // pred_fallthru
          _
        // Predicated region
        $region33: #{hp2m_forward.3} parent=11 // pred_check
          %p335 = pneg %p190
        $region34: #{hp2m_forward.3} parent=11 // pred_check_branch
          %337 = sbr.rel (%p335) target = $region36
        $region35: #{hp2m_forward.3} parent=11 // pred_region
          %339 = vsyncadd [#allocation8], 0
          %s340 = sshll.u32 %s6, 4
          %s341 = int_to_ptr.hbm [resolvable:$true] %s340
          %s342 = sshll.u32 [#allocation9], 4
          %s343 = int_to_ptr.vmem [resolvable:$true] %s342
          %348 = dma.hbm_to_vmem [thread:$0]  %s341, 96, %s343, [#allocation8], 32, 32, 2
        $region36: #{hp2m_forward.3} parent=11 // pred_fallthru
          _
        // Predicated region
        $region37: #{hp2m_forward.3} parent=11 // pred_check
          %p349 = pneg %p211
        $region38: #{hp2m_forward.3} parent=11 // pred_check_branch
          %351 = sbr.rel (%p349) target = $region40
        $region39: #{hp2m_forward.3} parent=11 // pred_region
          %353 = vsyncadd [#allocation11], 0
          %s354 = sshll.u32 %s7, 4
          %s355 = int_to_ptr.hbm [resolvable:$true] %s354
          %s356 = sshll.u32 [#allocation10], 4
          %s357 = int_to_ptr.vmem [resolvable:$true] %s356
          %362 = dma.hbm_to_vmem [thread:$0]  %s355, 6144, %s357, [#allocation11], 64, 64, 4
        $region40: #{hp2m_forward.3} parent=11 // pred_fallthru
          _
        // Predicated region
        $region41: #{hp2m_forward.3} parent=11 // pred_check
          %p363 = pneg %p232
        $region42: #{hp2m_forward.3} parent=11 // pred_check_branch
          %365 = sbr.rel (%p363) target = $region44
        $region43: #{hp2m_forward.3} parent=11 // pred_region
          %367 = vsyncadd [#allocation11], 0
          %s368 = sshll.u32 %s8, 4
          %s369 = int_to_ptr.hbm [resolvable:$true] %s368
          %s370 = sshll.u32 [#allocation12], 4
          %s371 = int_to_ptr.vmem [resolvable:$true] %s370
          %376 = dma.hbm_to_vmem [thread:$0]  %s369, 48, %s371, [#allocation11], 16, 16, 1
        $region44: #{hp2m_forward.3} parent=11 // pred_fallthru
          _
      $region12: #{hp2m_forward.3} parent=5 // pred_fallthru
        _
      %p377 = scmp.lt.s32.totalorder %s19, 20
      // Predicated region
      $region45: #{hp2m_forward.3} parent=5 // pred_check
        %p378 = pneg %p377
      $region46: #{hp2m_forward.3} parent=5 // pred_check_branch
        %380 = sbr.rel (%p378) target = $region48
      $region47: #{hp2m_forward.3} parent=5 // pred_region
        // Predicated region
        $region49: #{hp2m_forward.3} parent=47 // pred_check
          %p381 = pneg %p53
        $region50: #{hp2m_forward.3} parent=47 // pred_check_branch
          %383 = sbr.rel (%p381) target = $region52
        $region51: #{hp2m_forward.3} parent=47 // pred_region
          %p384 = scmp.lt.s32.totalorder %s27, 19
          %s385 = scalar_select %p384, %s27, 19
          %p386 = scmp.lt.s32.totalorder %s26, 0
          %s387 = scalar_select %p386, %s26, 0
          %s388 = smul.addr %s387, 2
          %s389 = smul.addr %s385, 2
          %s390 = sadd.s32 %s388, %s389
          %s391 = scalar_lea.vmem %s0, %s390
        $region52: #{hp2m_forward.3} parent=47 // pred_fallthru
          _
      $region48: #{hp2m_forward.3} parent=5 // pred_fallthru
        _
      %p392 = scmp.le.s32.totalorder 1, %s19
      %p393 = scmp.lt.s32.totalorder %s19, 21
      %p394 = pnand %p392, %p393
      %p395 = pneg %p394
      // Predicated region
      $region53: #{hp2m_forward.3} parent=5 // pred_check
        _
      $region54: #{hp2m_forward.3} parent=5 // pred_check_branch
        %397 = sbr.rel (%p394) target = $region56
      $region55: #{hp2m_forward.3} parent=5 // pred_region
        %s398 = ssub.s32 %s19, 1
        // Predicated region
        $region57: #{hp2m_forward.3} parent=55 // pred_check
          %p399 = pneg %p106
        $region58: #{hp2m_forward.3} parent=55 // pred_check_branch
          %401 = sbr.rel (%p399) target = $region60
        $region59: #{hp2m_forward.3} parent=55 // pred_region
          %403 = dma.done [#allocation3], 6912
        $region60: #{hp2m_forward.3} parent=55 // pred_fallthru
          _
        // Predicated region
        $region61: #{hp2m_forward.3} parent=55 // pred_check
          %p404 = pneg %p127
        $region62: #{hp2m_forward.3} parent=55 // pred_check_branch
          %406 = sbr.rel (%p404) target = $region64
        $region63: #{hp2m_forward.3} parent=55 // pred_region
          %408 = dma.done [#allocation5], 6144
        $region64: #{hp2m_forward.3} parent=55 // pred_fallthru
          _
        // Predicated region
        $region65: #{hp2m_forward.3} parent=55 // pred_check
          %p409 = pneg %p148
        $region66: #{hp2m_forward.3} parent=55 // pred_check_branch
          %411 = sbr.rel (%p409) target = $region68
        $region67: #{hp2m_forward.3} parent=55 // pred_region
          %413 = dma.done [#allocation5], 96
        $region68: #{hp2m_forward.3} parent=55 // pred_fallthru
          _
        // Predicated region
        $region69: #{hp2m_forward.3} parent=55 // pred_check
          %p414 = pneg %p169
        $region70: #{hp2m_forward.3} parent=55 // pred_check_branch
          %416 = sbr.rel (%p414) target = $region72
        $region71: #{hp2m_forward.3} parent=55 // pred_region
          %418 = dma.done [#allocation8], 12288
        $region72: #{hp2m_forward.3} parent=55 // pred_fallthru
          _
        // Predicated region
        $region73: #{hp2m_forward.3} parent=55 // pred_check
          %p419 = pneg %p190
        $region74: #{hp2m_forward.3} parent=55 // pred_check_branch
          %421 = sbr.rel (%p419) target = $region76
        $region75: #{hp2m_forward.3} parent=55 // pred_region
          %423 = dma.done [#allocation8], 96
        $region76: #{hp2m_forward.3} parent=55 // pred_fallthru
          _
        // Predicated region
        $region77: #{hp2m_forward.3} parent=55 // pred_check
          %p424 = pneg %p211
        $region78: #{hp2m_forward.3} parent=55 // pred_check_branch
          %426 = sbr.rel (%p424) target = $region80
        $region79: #{hp2m_forward.3} parent=55 // pred_region
          %428 = dma.done [#allocation11], 6144
        $region80: #{hp2m_forward.3} parent=55 // pred_fallthru
          _
        // Predicated region
        $region81: #{hp2m_forward.3} parent=55 // pred_check
          %p429 = pneg %p232
        $region82: #{hp2m_forward.3} parent=55 // pred_check_branch
          %431 = sbr.rel (%p429) target = $region84
        $region83: #{hp2m_forward.3} parent=55 // pred_region
          %433 = dma.done [#allocation11], 48
        $region84: #{hp2m_forward.3} parent=55 // pred_fallthru
          _
        %p434 = scmp.lt.s32.totalorder %s29, 19
        %s435 = scalar_select %p434, %s29, 19
        %p436 = scmp.lt.s32.totalorder %s28, 0
        %s437 = scalar_select %p436, %s28, 0
        %s438 = smul.addr %s437, 2
        %s439 = smul.addr %s435, 2
        %s440 = sadd.s32 %s438, %s439
        %s441 = scalar_lea.vmem %s0, %s440
        %p442 = pneg %p59
        %p443 = pneg %p56
        %p444 = scmp.lt.s32.totalorder %s28, 0
        %s445 = scalar_select %p444, %s28, 0
        %s446 = scalar_lea.vmem %s1, %s445
        %p447 = pneg %p85
        %p448 = pneg %p82
        %p449 = pneg %p106
        %p450 = pneg %p103
        %p451 = pneg %p127
        %p452 = pneg %p124
        %p453 = pneg %p148
        %p454 = pneg %p145
        %p455 = pneg %p169
        %p456 = pneg %p166
        %p457 = pneg %p190
        %p458 = pneg %p187
        %p459 = pneg %p211
        %p460 = pneg %p208
        %p461 = pneg %p232
        %p462 = pneg %p229
        %p463 = pneg %p260
        %p464 = pneg %p257
        %s465 = smul.u32 3, %s29
        %p466 = scmp.lt.s32.totalorder %s28, 0
        %s467 = scalar_select %p466, %s28, 0
        %p468 = scmp.lt.s32.totalorder %s465, 59
        %s469 = scalar_select %p468, %s465, 59
        %s470 = smul.addr %s467, 60
        %s471 = sadd.s32 %s469, %s470
        %s472 = scalar_lea.vmem %s9, %s471
        %p473 = scmp.lt.s32.totalorder %s29, 19
        %s474 = scalar_select %p473, %s29, 19
        %p475 = scmp.lt.s32.totalorder %s28, 0
        %s476 = scalar_select %p475, %s28, 0
        %s477 = smul.addr %s476, 2
        %s478 = smul.addr %s474, 2
        %s479 = sadd.s32 %s477, %s478
        %s480 = scalar_lea.vmem %s0, %s479
        %p481 = scmp.lt.s32.totalorder %s28, 0
        %s482 = scalar_select %p481, %s28, 0
        %s483 = scalar_lea.vmem %s1, %s482
        %s484 = smul.u32 3, %s29
        %p485 = scmp.lt.s32.totalorder %s28, 0
        %s486 = scalar_select %p485, %s28, 0
        %p487 = scmp.lt.s32.totalorder %s484, 59
        %s488 = scalar_select %p487, %s484, 59
        %s489 = smul.addr %s486, 60
        %s490 = sadd.s32 %s488, %s489
        %s491 = scalar_lea.vmem %s9, %s490
        %s492 = smul.u32 3, %s29
        %v494 = vld [vmem:[%s480] sm:$0x3]
        %v495 = vld [vmem:[%s483] sm:$0x1]
        %v496 = vld [vmem:[#allocation2] sm:$0xff]
        %v497 = vld [vmem:[#allocation2 + $0x8] sm:$0xff]
        %v498 = vld [vmem:[#allocation2 + $0x10] sm:$0xff]
        %v499 = vld [vmem:[#allocation2 + $0x18] sm:$0xff]
        %v500 = vld [vmem:[#allocation2 + $0x20] sm:$0xff]
        %v501 = vld [vmem:[#allocation2 + $0x28] sm:$0xff]
        %v502 = vld [vmem:[#allocation2 + $0x30] sm:$0xff]
        %v503 = vld [vmem:[#allocation2 + $0x38] sm:$0xff]
        %v504 = vld [vmem:[#allocation2 + $0x40] sm:$0xff]
        %v505 = vld [vmem:[#allocation2 + $0x48] sm:$0xff]
        %v506 = vld [vmem:[#allocation2 + $0x50] sm:$0xff]
        %v507 = vld [vmem:[#allocation2 + $0x58] sm:$0xff]
        %v508 = vld [vmem:[#allocation2 + $0x60] sm:$0xff]
        %v509 = vld [vmem:[#allocation2 + $0x68] sm:$0xff]
        %v510 = vld [vmem:[#allocation2 + $0x70] sm:$0xff]
        %v511 = vld [vmem:[#allocation2 + $0x78] sm:$0xff]
        %v512 = vld [vmem:[#allocation2 + $0x80] sm:$0xff]
        %v513 = vld [vmem:[#allocation2 + $0x88] sm:$0xff]
        %v514 = vld [vmem:[#allocation2 + $0x90] sm:$0xff]
        %v515 = vld [vmem:[#allocation2 + $0x98] sm:$0xff]
        %v516 = vld [vmem:[#allocation2 + $0xa0] sm:$0xff]
        %v517 = vld [vmem:[#allocation2 + $0xa8] sm:$0xff]
        %v518 = vld [vmem:[#allocation2 + $0xb0] sm:$0xff]
        %v519 = vld [vmem:[#allocation2 + $0xb8] sm:$0xff]
        %v520 = vld [vmem:[#allocation2 + $0xc0] sm:$0xff]
        %v521 = vld [vmem:[#allocation2 + $0xc8] sm:$0xff]
        %v522 = vld [vmem:[#allocation2 + $0xd0] sm:$0xff]
        %v523 = vld [vmem:[#allocation2 + $0xd8] sm:$0xff]
        %v524 = vld [vmem:[#allocation2 + $0xe0] sm:$0xff]
        %v525 = vld [vmem:[#allocation2 + $0xe8] sm:$0xff]
        %v526 = vld [vmem:[#allocation2 + $0xf0] sm:$0xff]
        %v527 = vld [vmem:[#allocation2 + $0xf8] sm:$0xff]
        %v528 = vld [vmem:[#allocation2 + $0x100] sm:$0xff]
        %v529 = vld [vmem:[#allocation2 + $0x108] sm:$0xff]
        %v530 = vld [vmem:[#allocation2 + $0x110] sm:$0xff]
        %v531 = vld [vmem:[#allocation2 + $0x118] sm:$0xff]
        %v532 = vld [vmem:[#allocation2 + $0x120] sm:$0xff]
        %v533 = vld [vmem:[#allocation2 + $0x128] sm:$0xff]
        %v534 = vld [vmem:[#allocation2 + $0x130] sm:$0xff]
        %v535 = vld [vmem:[#allocation2 + $0x138] sm:$0xff]
        %v536 = vld [vmem:[#allocation2 + $0x140] sm:$0xff]
        %v537 = vld [vmem:[#allocation2 + $0x148] sm:$0xff]
        %v538 = vld [vmem:[#allocation2 + $0x150] sm:$0xff]
        %v539 = vld [vmem:[#allocation2 + $0x158] sm:$0xff]
        %v540 = vld [vmem:[#allocation2 + $0x160] sm:$0xff]
        %v541 = vld [vmem:[#allocation2 + $0x168] sm:$0xff]
        %v542 = vld [vmem:[#allocation2 + $0x170] sm:$0xff]
        %v543 = vld [vmem:[#allocation2 + $0x178] sm:$0xff]
        %v544 = vld [vmem:[#allocation2 + $0x180] sm:$0xff]
        %v545 = vld [vmem:[#allocation2 + $0x188] sm:$0xff]
        %v546 = vld [vmem:[#allocation2 + $0x190] sm:$0xff]
        %v547 = vld [vmem:[#allocation2 + $0x198] sm:$0x33]
        %v548 = vld [vmem:[#allocation2 + $0x1a0] sm:$0x33]
        %v549 = vld [vmem:[#allocation2 + $0x1a8] sm:$0x33]
        %v550 = vld [vmem:[#allocation4] sm:$0xff]
        %v551 = vld [vmem:[#allocation4 + $0x8] sm:$0xff]
        %v552 = vld [vmem:[#allocation4 + $0x10] sm:$0xff]
        %v553 = vld [vmem:[#allocation4 + $0x18] sm:$0xff]
        %v554 = vld [vmem:[#allocation4 + $0x20] sm:$0xff]
        %v555 = vld [vmem:[#allocation4 + $0x28] sm:$0xff]
        %v556 = vld [vmem:[#allocation4 + $0x30] sm:$0xff]
        %v557 = vld [vmem:[#allocation4 + $0x38] sm:$0xff]
        %v558 = vld [vmem:[#allocation4 + $0x40] sm:$0xff]
        %v559 = vld [vmem:[#allocation4 + $0x48] sm:$0xff]
        %v560 = vld [vmem:[#allocation4 + $0x50] sm:$0xff]
        %v561 = vld [vmem:[#allocation4 + $0x58] sm:$0xff]
        %v562 = vld [vmem:[#allocation4 + $0x60] sm:$0xff]
        %v563 = vld [vmem:[#allocation4 + $0x68] sm:$0xff]
        %v564 = vld [vmem:[#allocation4 + $0x70] sm:$0xff]
        %v565 = vld [vmem:[#allocation4 + $0x78] sm:$0xff]
        %v566 = vld [vmem:[#allocation4 + $0x80] sm:$0xff]
        %v567 = vld [vmem:[#allocation4 + $0x88] sm:$0xff]
        %v568 = vld [vmem:[#allocation4 + $0x90] sm:$0xff]
        %v569 = vld [vmem:[#allocation4 + $0x98] sm:$0xff]
        %v570 = vld [vmem:[#allocation4 + $0xa0] sm:$0xff]
        %v571 = vld [vmem:[#allocation4 + $0xa8] sm:$0xff]
        %v572 = vld [vmem:[#allocation4 + $0xb0] sm:$0xff]
        %v573 = vld [vmem:[#allocation4 + $0xb8] sm:$0xff]
        %v574 = vld [vmem:[#allocation4 + $0xc0] sm:$0xff]
        %v575 = vld [vmem:[#allocation4 + $0xc8] sm:$0xff]
        %v576 = vld [vmem:[#allocation4 + $0xd0] sm:$0xff]
        %v577 = vld [vmem:[#allocation4 + $0xd8] sm:$0xff]
        %v578 = vld [vmem:[#allocation4 + $0xe0] sm:$0xff]
        %v579 = vld [vmem:[#allocation4 + $0xe8] sm:$0xff]
        %v580 = vld [vmem:[#allocation4 + $0xf0] sm:$0xff]
        %v581 = vld [vmem:[#allocation4 + $0xf8] sm:$0xff]
        %v582 = vld [vmem:[#allocation4 + $0x100] sm:$0xff]
        %v583 = vld [vmem:[#allocation4 + $0x108] sm:$0xff]
        %v584 = vld [vmem:[#allocation4 + $0x110] sm:$0xff]
        %v585 = vld [vmem:[#allocation4 + $0x118] sm:$0xff]
        %v586 = vld [vmem:[#allocation4 + $0x120] sm:$0xff]
        %v587 = vld [vmem:[#allocation4 + $0x128] sm:$0xff]
        %v588 = vld [vmem:[#allocation4 + $0x130] sm:$0xff]
        %v589 = vld [vmem:[#allocation4 + $0x138] sm:$0xff]
        %v590 = vld [vmem:[#allocation4 + $0x140] sm:$0xff]
        %v591 = vld [vmem:[#allocation4 + $0x148] sm:$0xff]
        %v592 = vld [vmem:[#allocation4 + $0x150] sm:$0xff]
        %v593 = vld [vmem:[#allocation4 + $0x158] sm:$0xff]
        %v594 = vld [vmem:[#allocation4 + $0x160] sm:$0xff]
        %v595 = vld [vmem:[#allocation4 + $0x168] sm:$0xff]
        %v596 = vld [vmem:[#allocation4 + $0x170] sm:$0xff]
        %v597 = vld [vmem:[#allocation4 + $0x178] sm:$0xff]
        %v646 = vunpack.c.l.b16 %v550
        %v647 = vunpack.c.h.b16 %v550
        %v648 = vunpack.c.l.b16 %v551
        %v649 = vunpack.c.h.b16 %v551
        %v650 = vunpack.c.l.b16 %v552
        %v651 = vunpack.c.h.b16 %v552
        %v652 = vunpack.c.l.b16 %v553
        %v653 = vunpack.c.h.b16 %v553
        %v654 = vunpack.c.l.b16 %v554
        %v655 = vunpack.c.h.b16 %v554
        %v656 = vunpack.c.l.b16 %v555
        %v657 = vunpack.c.h.b16 %v555
        %v658 = vunpack.c.l.b16 %v556
        %v659 = vunpack.c.h.b16 %v556
        %v660 = vunpack.c.l.b16 %v557
        %v661 = vunpack.c.h.b16 %v557
        %v662 = vunpack.c.l.b16 %v558
        %v663 = vunpack.c.h.b16 %v558
        %v664 = vunpack.c.l.b16 %v559
        %v665 = vunpack.c.h.b16 %v559
        %v666 = vunpack.c.l.b16 %v560
        %v667 = vunpack.c.h.b16 %v560
        %v668 = vunpack.c.l.b16 %v561
        %v669 = vunpack.c.h.b16 %v561
        %v670 = vunpack.c.l.b16 %v562
        %v671 = vunpack.c.h.b16 %v562
        %v672 = vunpack.c.l.b16 %v563
        %v673 = vunpack.c.h.b16 %v563
        %v674 = vunpack.c.l.b16 %v564
        %v675 = vunpack.c.h.b16 %v564
        %v676 = vunpack.c.l.b16 %v565
        %v677 = vunpack.c.h.b16 %v565
        %v678 = vunpack.c.l.b16 %v566
        %v679 = vunpack.c.h.b16 %v566
        %v680 = vunpack.c.l.b16 %v567
        %v681 = vunpack.c.h.b16 %v567
        %v682 = vunpack.c.l.b16 %v568
        %v683 = vunpack.c.h.b16 %v568
        %v684 = vunpack.c.l.b16 %v569
        %v685 = vunpack.c.h.b16 %v569
        %v686 = vunpack.c.l.b16 %v570
        %v687 = vunpack.c.h.b16 %v570
        %v688 = vunpack.c.l.b16 %v571
        %v689 = vunpack.c.h.b16 %v571
        %v690 = vunpack.c.l.b16 %v572
        %v691 = vunpack.c.h.b16 %v572
        %v692 = vunpack.c.l.b16 %v573
        %v693 = vunpack.c.h.b16 %v573
        %v694 = vunpack.c.l.b16 %v574
        %v695 = vunpack.c.h.b16 %v574
        %v696 = vunpack.c.l.b16 %v575
        %v697 = vunpack.c.h.b16 %v575
        %v698 = vunpack.c.l.b16 %v576
        %v699 = vunpack.c.h.b16 %v576
        %v700 = vunpack.c.l.b16 %v577
        %v701 = vunpack.c.h.b16 %v577
        %v702 = vunpack.c.l.b16 %v578
        %v703 = vunpack.c.h.b16 %v578
        %v704 = vunpack.c.l.b16 %v579
        %v705 = vunpack.c.h.b16 %v579
        %v706 = vunpack.c.l.b16 %v580
        %v707 = vunpack.c.h.b16 %v580
        %v708 = vunpack.c.l.b16 %v581
        %v709 = vunpack.c.h.b16 %v581
        %v710 = vunpack.c.l.b16 %v582
        %v711 = vunpack.c.h.b16 %v582
        %v712 = vunpack.c.l.b16 %v583
        %v713 = vunpack.c.h.b16 %v583
        %v714 = vunpack.c.l.b16 %v584
        %v715 = vunpack.c.h.b16 %v584
        %v716 = vunpack.c.l.b16 %v585
        %v717 = vunpack.c.h.b16 %v585
        %v718 = vunpack.c.l.b16 %v586
        %v719 = vunpack.c.h.b16 %v586
        %v720 = vunpack.c.l.b16 %v587
        %v721 = vunpack.c.h.b16 %v587
        %v722 = vunpack.c.l.b16 %v588
        %v723 = vunpack.c.h.b16 %v588
        %v724 = vunpack.c.l.b16 %v589
        %v725 = vunpack.c.h.b16 %v589
        %v726 = vunpack.c.l.b16 %v590
        %v727 = vunpack.c.h.b16 %v590
        %v728 = vunpack.c.l.b16 %v591
        %v729 = vunpack.c.h.b16 %v591
        %v730 = vunpack.c.l.b16 %v592
        %v731 = vunpack.c.h.b16 %v592
        %v732 = vunpack.c.l.b16 %v593
        %v733 = vunpack.c.h.b16 %v593
        %v734 = vunpack.c.l.b16 %v594
        %v735 = vunpack.c.h.b16 %v594
        %v736 = vunpack.c.l.b16 %v595
        %v737 = vunpack.c.h.b16 %v595
        %v738 = vunpack.c.l.b16 %v596
        %v739 = vunpack.c.h.b16 %v596
        %v740 = vunpack.c.l.b16 %v597
        %v741 = vunpack.c.h.b16 %v597
        %v742 = vpack.c.b16 %v652, %v646
        %v743 = vpack.c.b16 %v653, %v647
        %v744 = vpack.c.b16 %v654, %v648
        %v745 = vpack.c.b16 %v655, %v649
        %v746 = vpack.c.b16 %v656, %v650
        %v747 = vpack.c.b16 %v657, %v651
        %v748 = vpack.c.b16 %v664, %v658
        %v749 = vpack.c.b16 %v665, %v659
        %v750 = vpack.c.b16 %v666, %v660
        %v751 = vpack.c.b16 %v667, %v661
        %v752 = vpack.c.b16 %v668, %v662
        %v753 = vpack.c.b16 %v669, %v663
        %v754 = vpack.c.b16 %v676, %v670
        %v755 = vpack.c.b16 %v677, %v671
        %v756 = vpack.c.b16 %v678, %v672
        %v757 = vpack.c.b16 %v679, %v673
        %v758 = vpack.c.b16 %v680, %v674
        %v759 = vpack.c.b16 %v681, %v675
        %v760 = vpack.c.b16 %v688, %v682
        %v761 = vpack.c.b16 %v689, %v683
        %v762 = vpack.c.b16 %v690, %v684
        %v763 = vpack.c.b16 %v691, %v685
        %v764 = vpack.c.b16 %v692, %v686
        %v765 = vpack.c.b16 %v693, %v687
        %v766 = vpack.c.b16 %v700, %v694
        %v767 = vpack.c.b16 %v701, %v695
        %v768 = vpack.c.b16 %v702, %v696
        %v769 = vpack.c.b16 %v703, %v697
        %v770 = vpack.c.b16 %v704, %v698
        %v771 = vpack.c.b16 %v705, %v699
        %v772 = vpack.c.b16 %v712, %v706
        %v773 = vpack.c.b16 %v713, %v707
        %v774 = vpack.c.b16 %v714, %v708
        %v775 = vpack.c.b16 %v715, %v709
        %v776 = vpack.c.b16 %v716, %v710
        %v777 = vpack.c.b16 %v717, %v711
        %v778 = vpack.c.b16 %v724, %v718
        %v779 = vpack.c.b16 %v725, %v719
        %v780 = vpack.c.b16 %v726, %v720
        %v781 = vpack.c.b16 %v727, %v721
        %v782 = vpack.c.b16 %v728, %v722
        %v783 = vpack.c.b16 %v729, %v723
        %v784 = vpack.c.b16 %v736, %v730
        %v785 = vpack.c.b16 %v737, %v731
        %v786 = vpack.c.b16 %v738, %v732
        %v787 = vpack.c.b16 %v739, %v733
        %v788 = vpack.c.b16 %v740, %v734
        %v789 = vpack.c.b16 %v741, %v735
        %838 = vmatpush.bf16.msra.mxu0 %v784
        %839 = vmatpush.bf16.msra.mxu0 %v778
        %840 = vmatpush.bf16.msra.mxu0 %v772
        %841 = vmatpush.bf16.msra.mxu0 %v766
        %842 = vmatpush.bf16.msra.mxu0 %v760
        %843 = vmatpush.bf16.msra.mxu0 %v754
        %844 = vmatpush.bf16.msra.mxu0 %v748
        %845 = vmatpush.bf16.msra.mxu0 %v742
        %846 = vmatmul.bf16.gmra.mxu0 %v495
        %v847 = vpop.f32.mrf.mxu0
        %v848 = vadd.f32 0.0, %v847
        %v849 = vpop.f32.mrf.mxu0
        %850 = vdwg.mxu0
        %851 = vmatpush.bf16.msra.mxu0 %v785
        %852 = vmatpush.bf16.msra.mxu0 %v779
        %853 = vmatpush.bf16.msra.mxu0 %v773
        %854 = vmatpush.bf16.msra.mxu0 %v767
        %855 = vmatpush.bf16.msra.mxu0 %v761
        %856 = vmatpush.bf16.msra.mxu0 %v755
        %857 = vmatpush.bf16.msra.mxu0 %v749
        %858 = vmatpush.bf16.msra.mxu0 %v743
        %859 = vmatmul.bf16.gmra.mxu0 %v495
        %v860 = vpop.f32.mrf.mxu0
        %v861 = vadd.f32 0.0, %v860
        %v862 = vpop.f32.mrf.mxu0
        %863 = vdwg.mxu0
        %864 = vmatpush.bf16.msra.mxu0 %v786
        %865 = vmatpush.bf16.msra.mxu0 %v780
        %866 = vmatpush.bf16.msra.mxu0 %v774
        %867 = vmatpush.bf16.msra.mxu0 %v768
        %868 = vmatpush.bf16.msra.mxu0 %v762
        %869 = vmatpush.bf16.msra.mxu0 %v756
        %870 = vmatpush.bf16.msra.mxu0 %v750
        %871 = vmatpush.bf16.msra.mxu0 %v744
        %872 = vmatmul.bf16.gmra.mxu0 %v495
        %v873 = vpop.f32.mrf.mxu0
        %v874 = vadd.f32 0.0, %v873
        %v875 = vpop.f32.mrf.mxu0
        %876 = vdwg.mxu0
        %877 = vmatpush.bf16.msra.mxu0 %v787
        %878 = vmatpush.bf16.msra.mxu0 %v781
        %879 = vmatpush.bf16.msra.mxu0 %v775
        %880 = vmatpush.bf16.msra.mxu0 %v769
        %881 = vmatpush.bf16.msra.mxu0 %v763
        %882 = vmatpush.bf16.msra.mxu0 %v757
        %883 = vmatpush.bf16.msra.mxu0 %v751
        %884 = vmatpush.bf16.msra.mxu0 %v745
        %885 = vmatmul.bf16.gmra.mxu0 %v495
        %v886 = vpop.f32.mrf.mxu0
        %v887 = vadd.f32 0.0, %v886
        %v888 = vpop.f32.mrf.mxu0
        %889 = vdwg.mxu0
        %890 = vmatpush.bf16.msra.mxu0 %v788
        %891 = vmatpush.bf16.msra.mxu0 %v782
        %892 = vmatpush.bf16.msra.mxu0 %v776
        %893 = vmatpush.bf16.msra.mxu0 %v770
        %894 = vmatpush.bf16.msra.mxu0 %v764
        %895 = vmatpush.bf16.msra.mxu0 %v758
        %896 = vmatpush.bf16.msra.mxu0 %v752
        %897 = vmatpush.bf16.msra.mxu0 %v746
        %898 = vmatmul.bf16.gmra.mxu0 %v495
        %v899 = vpop.f32.mrf.mxu0
        %v900 = vadd.f32 0.0, %v899
        %v901 = vpop.f32.mrf.mxu0
        %902 = vdwg.mxu0
        %903 = vmatpush.bf16.msra.mxu0 %v789
        %904 = vmatpush.bf16.msra.mxu0 %v783
        %905 = vmatpush.bf16.msra.mxu0 %v777
        %906 = vmatpush.bf16.msra.mxu0 %v771
        %907 = vmatpush.bf16.msra.mxu0 %v765
        %908 = vmatpush.bf16.msra.mxu0 %v759
        %909 = vmatpush.bf16.msra.mxu0 %v753
        %910 = vmatpush.bf16.msra.mxu0 %v747
        %911 = vmatmul.bf16.gmra.mxu0 %v495
        %v912 = vpop.f32.mrf.mxu0
        %v913 = vadd.f32 0.0, %v912
        %v914 = vpop.f32.mrf.mxu0
        %915 = vdwg.mxu0
        %917 = vst [vmem:[#allocation1] ss:$9 sm:$0xff] %v494
        %v918 = vld [vmem:[#allocation1] sm:$0xff]
        %v919 = vld [vmem:[#allocation1 + $0x9] sm:$0xff]
        %v975 = vunpack.c.l.b16 %v496
        %v976 = vunpack.c.h.b16 %v496
        %v977 = vunpack.c.l.b16 %v497
        %v978 = vunpack.c.h.b16 %v497
        %v979 = vunpack.c.l.b16 %v498
        %v980 = vunpack.c.h.b16 %v498
        %v981 = vunpack.c.l.b16 %v499
        %v982 = vunpack.c.h.b16 %v499
        %v983 = vunpack.c.l.b16 %v500
        %v984 = vunpack.c.h.b16 %v500
        %v985 = vunpack.c.l.b16 %v501
        %v986 = vunpack.c.h.b16 %v501
        %v987 = vunpack.c.l.b16 %v502
        %v988 = vunpack.c.h.b16 %v502
        %v989 = vunpack.c.l.b16 %v503
        %v990 = vunpack.c.h.b16 %v503
        %v991 = vunpack.c.l.b16 %v504
        %v992 = vunpack.c.h.b16 %v504
        %v993 = vunpack.c.l.b16 %v505
        %v994 = vunpack.c.h.b16 %v505
        %v995 = vunpack.c.l.b16 %v506
        %v996 = vunpack.c.h.b16 %v506
        %v997 = vunpack.c.l.b16 %v507
        %v998 = vunpack.c.h.b16 %v507
        %v999 = vunpack.c.l.b16 %v508
        %v1000 = vunpack.c.h.b16 %v508
        %v1001 = vunpack.c.l.b16 %v509
        %v1002 = vunpack.c.h.b16 %v509
        %v1003 = vunpack.c.l.b16 %v510
        %v1004 = vunpack.c.h.b16 %v510
        %v1005 = vunpack.c.l.b16 %v511
        %v1006 = vunpack.c.h.b16 %v511
        %v1007 = vunpack.c.l.b16 %v512
        %v1008 = vunpack.c.h.b16 %v512
        %v1009 = vunpack.c.l.b16 %v513
        %v1010 = vunpack.c.h.b16 %v513
        %v1011 = vunpack.c.l.b16 %v514
        %v1012 = vunpack.c.h.b16 %v514
        %v1013 = vunpack.c.l.b16 %v515
        %v1014 = vunpack.c.h.b16 %v515
        %v1015 = vunpack.c.l.b16 %v516
        %v1016 = vunpack.c.h.b16 %v516
        %v1017 = vunpack.c.l.b16 %v517
        %v1018 = vunpack.c.h.b16 %v517
        %v1019 = vunpack.c.l.b16 %v518
        %v1020 = vunpack.c.h.b16 %v518
        %v1021 = vunpack.c.l.b16 %v519
        %v1022 = vunpack.c.h.b16 %v519
        %v1023 = vunpack.c.l.b16 %v520
        %v1024 = vunpack.c.h.b16 %v520
        %v1025 = vunpack.c.l.b16 %v521
        %v1026 = vunpack.c.h.b16 %v521
        %v1027 = vunpack.c.l.b16 %v522
        %v1028 = vunpack.c.h.b16 %v522
        %v1029 = vunpack.c.l.b16 %v523
        %v1030 = vunpack.c.h.b16 %v523
        %v1031 = vunpack.c.l.b16 %v524
        %v1032 = vunpack.c.h.b16 %v524
        %v1033 = vunpack.c.l.b16 %v525
        %v1034 = vunpack.c.h.b16 %v525
        %v1035 = vunpack.c.l.b16 %v526
        %v1036 = vunpack.c.h.b16 %v526
        %v1037 = vunpack.c.l.b16 %v527
        %v1038 = vunpack.c.h.b16 %v527
        %v1039 = vunpack.c.l.b16 %v528
        %v1040 = vunpack.c.h.b16 %v528
        %v1041 = vunpack.c.l.b16 %v529
        %v1042 = vunpack.c.h.b16 %v529
        %v1043 = vunpack.c.l.b16 %v530
        %v1044 = vunpack.c.h.b16 %v530
        %v1045 = vunpack.c.l.b16 %v531
        %v1046 = vunpack.c.h.b16 %v531
        %v1047 = vunpack.c.l.b16 %v532
        %v1048 = vunpack.c.h.b16 %v532
        %v1049 = vunpack.c.l.b16 %v533
        %v1050 = vunpack.c.h.b16 %v533
        %v1051 = vunpack.c.l.b16 %v534
        %v1052 = vunpack.c.h.b16 %v534
        %v1053 = vunpack.c.l.b16 %v535
        %v1054 = vunpack.c.h.b16 %v535
        %v1055 = vunpack.c.l.b16 %v536
        %v1056 = vunpack.c.h.b16 %v536
        %v1057 = vunpack.c.l.b16 %v537
        %v1058 = vunpack.c.h.b16 %v537
        %v1059 = vunpack.c.l.b16 %v538
        %v1060 = vunpack.c.h.b16 %v538
        %v1061 = vunpack.c.l.b16 %v539
        %v1062 = vunpack.c.h.b16 %v539
        %v1063 = vunpack.c.l.b16 %v540
        %v1064 = vunpack.c.h.b16 %v540
        %v1065 = vunpack.c.l.b16 %v541
        %v1066 = vunpack.c.h.b16 %v541
        %v1067 = vunpack.c.l.b16 %v542
        %v1068 = vunpack.c.h.b16 %v542
        %v1069 = vunpack.c.l.b16 %v543
        %v1070 = vunpack.c.h.b16 %v543
        %v1071 = vunpack.c.l.b16 %v544
        %v1072 = vunpack.c.h.b16 %v544
        %v1073 = vunpack.c.l.b16 %v545
        %v1074 = vunpack.c.h.b16 %v545
        %v1075 = vunpack.c.l.b16 %v546
        %v1076 = vunpack.c.h.b16 %v546
        %v1077 = vunpack.c.l.b16 %v547
        %v1078 = vunpack.c.h.b16 %v547
        %v1079 = vunpack.c.l.b16 %v548
        %v1080 = vunpack.c.h.b16 %v548
        %v1081 = vunpack.c.l.b16 %v549
        %v1082 = vunpack.c.h.b16 %v549
        %v1083 = vpack.c.b16 %v981, %v975
        %v1084 = vpack.c.b16 %v982, %v976
        %v1085 = vpack.c.b16 %v983, %v977
        %v1086 = vpack.c.b16 %v984, %v978
        %v1087 = vpack.c.b16 %v985, %v979
        %v1088 = vpack.c.b16 %v986, %v980
        %v1089 = vpack.c.b16 %v993, %v987
        %v1090 = vpack.c.b16 %v994, %v988
        %v1091 = vpack.c.b16 %v995, %v989
        %v1092 = vpack.c.b16 %v996, %v990
        %v1093 = vpack.c.b16 %v997, %v991
        %v1094 = vpack.c.b16 %v998, %v992
        %v1095 = vpack.c.b16 %v1005, %v999
        %v1096 = vpack.c.b16 %v1006, %v1000
        %v1097 = vpack.c.b16 %v1007, %v1001
        %v1098 = vpack.c.b16 %v1008, %v1002
        %v1099 = vpack.c.b16 %v1009, %v1003
        %v1100 = vpack.c.b16 %v1010, %v1004
        %v1101 = vpack.c.b16 %v1017, %v1011
        %v1102 = vpack.c.b16 %v1018, %v1012
        %v1103 = vpack.c.b16 %v1019, %v1013
        %v1104 = vpack.c.b16 %v1020, %v1014
        %v1105 = vpack.c.b16 %v1021, %v1015
        %v1106 = vpack.c.b16 %v1022, %v1016
        %v1107 = vpack.c.b16 %v1029, %v1023
        %v1108 = vpack.c.b16 %v1030, %v1024
        %v1109 = vpack.c.b16 %v1031, %v1025
        %v1110 = vpack.c.b16 %v1032, %v1026
        %v1111 = vpack.c.b16 %v1033, %v1027
        %v1112 = vpack.c.b16 %v1034, %v1028
        %v1113 = vpack.c.b16 %v1041, %v1035
        %v1114 = vpack.c.b16 %v1042, %v1036
        %v1115 = vpack.c.b16 %v1043, %v1037
        %v1116 = vpack.c.b16 %v1044, %v1038
        %v1117 = vpack.c.b16 %v1045, %v1039
        %v1118 = vpack.c.b16 %v1046, %v1040
        %v1119 = vpack.c.b16 %v1053, %v1047
        %v1120 = vpack.c.b16 %v1054, %v1048
        %v1121 = vpack.c.b16 %v1055, %v1049
        %v1122 = vpack.c.b16 %v1056, %v1050
        %v1123 = vpack.c.b16 %v1057, %v1051
        %v1124 = vpack.c.b16 %v1058, %v1052
        %v1125 = vpack.c.b16 %v1065, %v1059
        %v1126 = vpack.c.b16 %v1066, %v1060
        %v1127 = vpack.c.b16 %v1067, %v1061
        %v1128 = vpack.c.b16 %v1068, %v1062
        %v1129 = vpack.c.b16 %v1069, %v1063
        %v1130 = vpack.c.b16 %v1070, %v1064
        %v1131 = vpack.c.b16 %v1077, %v1071
        %v1132 = vpack.c.b16 %v1078, %v1072
        %v1133 = vpack.c.b16 %v1079, %v1073
        %v1134 = vpack.c.b16 %v1080, %v1074
        %v1135 = vpack.c.b16 %v1081, %v1075
        %v1136 = vpack.c.b16 %v1082, %v1076
        %vm1185 = vcmask 97280
        %v1186 = vsel %vm1185, %v919, 0
        %vm1188 = vcmask 1045504
        %v1190 = vsel %vm1188, %v1131, 0
        %v1193 = vsel %vm1188, %v1132, 0
        %v1196 = vsel %vm1188, %v1133, 0
        %v1199 = vsel %vm1188, %v1134, 0
        %v1202 = vsel %vm1188, %v1135, 0
        %v1205 = vsel %vm1188, %v1136, 0
        %1207 = vmatpush.bf16.msra.mxu0 %v1125
        %1208 = vmatpush.bf16.msra.mxu0 %v1119
        %1209 = vmatpush.bf16.msra.mxu0 %v1113
        %1210 = vmatpush.bf16.msra.mxu0 %v1107
        %1211 = vmatpush.bf16.msra.mxu0 %v1101
        %1212 = vmatpush.bf16.msra.mxu0 %v1095
        %1213 = vmatpush.bf16.msra.mxu0 %v1089
        %1214 = vmatpush.bf16.msra.mxu0 %v1083
        %1215 = vmatmul.bf16.gmra.mxu0 %v918
        %v1216 = vpop.f32.mrf.mxu0
        %v1217 = vadd.f32 %v848, %v1216
        %v1218 = vpop.f32.mrf.mxu0
        %1219 = vdwg.mxu0
        %1220 = vmatpush.bf16.msra.mxu0 0
        %1221 = vmatpush.bf16.msra.mxu0 0
        %1222 = vmatpush.bf16.msra.mxu0 0
        %1223 = vmatpush.bf16.msra.mxu0 0
        %1224 = vmatpush.bf16.msra.mxu0 0
        %1225 = vmatpush.bf16.msra.mxu0 0
        %1226 = vmatpush.bf16.msra.mxu0 0
        %1227 = vmatpush.bf16.msra.mxu0 %v1190
        %1228 = vmatmul.bf16.gmra.mxu0 %v1186
        %v1229 = vpop.f32.mrf.mxu0
        %v1230 = vadd.f32 %v1217, %v1229
        %v1231 = vpop.f32.mrf.mxu0
        %1232 = vdwg.mxu0
        %1233 = vmatpush.bf16.msra.mxu0 %v1126
        %1234 = vmatpush.bf16.msra.mxu0 %v1120
        %1235 = vmatpush.bf16.msra.mxu0 %v1114
        %1236 = vmatpush.bf16.msra.mxu0 %v1108
        %1237 = vmatpush.bf16.msra.mxu0 %v1102
        %1238 = vmatpush.bf16.msra.mxu0 %v1096
        %1239 = vmatpush.bf16.msra.mxu0 %v1090
        %1240 = vmatpush.bf16.msra.mxu0 %v1084
        %1241 = vmatmul.bf16.gmra.mxu0 %v918
        %v1242 = vpop.f32.mrf.mxu0
        %v1243 = vadd.f32 %v861, %v1242
        %v1244 = vpop.f32.mrf.mxu0
        %1245 = vdwg.mxu0
        %1246 = vmatpush.bf16.msra.mxu0 0
        %1247 = vmatpush.bf16.msra.mxu0 0
        %1248 = vmatpush.bf16.msra.mxu0 0
        %1249 = vmatpush.bf16.msra.mxu0 0
        %1250 = vmatpush.bf16.msra.mxu0 0
        %1251 = vmatpush.bf16.msra.mxu0 0
        %1252 = vmatpush.bf16.msra.mxu0 0
        %1253 = vmatpush.bf16.msra.mxu0 %v1193
        %1254 = vmatmul.bf16.gmra.mxu0 %v1186
        %v1255 = vpop.f32.mrf.mxu0
        %v1256 = vadd.f32 %v1243, %v1255
        %v1257 = vpop.f32.mrf.mxu0
        %1258 = vdwg.mxu0
        %1259 = vmatpush.bf16.msra.mxu0 %v1127
        %1260 = vmatpush.bf16.msra.mxu0 %v1121
        %1261 = vmatpush.bf16.msra.mxu0 %v1115
        %1262 = vmatpush.bf16.msra.mxu0 %v1109
        %1263 = vmatpush.bf16.msra.mxu0 %v1103
        %1264 = vmatpush.bf16.msra.mxu0 %v1097
        %1265 = vmatpush.bf16.msra.mxu0 %v1091
        %1266 = vmatpush.bf16.msra.mxu0 %v1085
        %1267 = vmatmul.bf16.gmra.mxu0 %v918
        %v1268 = vpop.f32.mrf.mxu0
        %v1269 = vadd.f32 %v874, %v1268
        %v1270 = vpop.f32.mrf.mxu0
        %1271 = vdwg.mxu0
        %1272 = vmatpush.bf16.msra.mxu0 0
        %1273 = vmatpush.bf16.msra.mxu0 0
        %1274 = vmatpush.bf16.msra.mxu0 0
        %1275 = vmatpush.bf16.msra.mxu0 0
        %1276 = vmatpush.bf16.msra.mxu0 0
        %1277 = vmatpush.bf16.msra.mxu0 0
        %1278 = vmatpush.bf16.msra.mxu0 0
        %1279 = vmatpush.bf16.msra.mxu0 %v1196
        %1280 = vmatmul.bf16.gmra.mxu0 %v1186
        %v1281 = vpop.f32.mrf.mxu0
        %v1282 = vadd.f32 %v1269, %v1281
        %v1283 = vpop.f32.mrf.mxu0
        %1284 = vdwg.mxu0
        %1285 = vmatpush.bf16.msra.mxu0 %v1128
        %1286 = vmatpush.bf16.msra.mxu0 %v1122
        %1287 = vmatpush.bf16.msra.mxu0 %v1116
        %1288 = vmatpush.bf16.msra.mxu0 %v1110
        %1289 = vmatpush.bf16.msra.mxu0 %v1104
        %1290 = vmatpush.bf16.msra.mxu0 %v1098
        %1291 = vmatpush.bf16.msra.mxu0 %v1092
        %1292 = vmatpush.bf16.msra.mxu0 %v1086
        %1293 = vmatmul.bf16.gmra.mxu0 %v918
        %v1294 = vpop.f32.mrf.mxu0
        %v1295 = vadd.f32 %v887, %v1294
        %v1296 = vpop.f32.mrf.mxu0
        %1297 = vdwg.mxu0
        %1298 = vmatpush.bf16.msra.mxu0 0
        %1299 = vmatpush.bf16.msra.mxu0 0
        %1300 = vmatpush.bf16.msra.mxu0 0
        %1301 = vmatpush.bf16.msra.mxu0 0
        %1302 = vmatpush.bf16.msra.mxu0 0
        %1303 = vmatpush.bf16.msra.mxu0 0
        %1304 = vmatpush.bf16.msra.mxu0 0
        %1305 = vmatpush.bf16.msra.mxu0 %v1199
        %1306 = vmatmul.bf16.gmra.mxu0 %v1186
        %v1307 = vpop.f32.mrf.mxu0
        %v1308 = vadd.f32 %v1295, %v1307
        %v1309 = vpop.f32.mrf.mxu0
        %1310 = vdwg.mxu0
        %1311 = vmatpush.bf16.msra.mxu0 %v1129
        %1312 = vmatpush.bf16.msra.mxu0 %v1123
        %1313 = vmatpush.bf16.msra.mxu0 %v1117
        %1314 = vmatpush.bf16.msra.mxu0 %v1111
        %1315 = vmatpush.bf16.msra.mxu0 %v1105
        %1316 = vmatpush.bf16.msra.mxu0 %v1099
        %1317 = vmatpush.bf16.msra.mxu0 %v1093
        %1318 = vmatpush.bf16.msra.mxu0 %v1087
        %1319 = vmatmul.bf16.gmra.mxu0 %v918
        %v1320 = vpop.f32.mrf.mxu0
        %v1321 = vadd.f32 %v900, %v1320
        %v1322 = vpop.f32.mrf.mxu0
        %1323 = vdwg.mxu0
        %1324 = vmatpush.bf16.msra.mxu0 0
        %1325 = vmatpush.bf16.msra.mxu0 0
        %1326 = vmatpush.bf16.msra.mxu0 0
        %1327 = vmatpush.bf16.msra.mxu0 0
        %1328 = vmatpush.bf16.msra.mxu0 0
        %1329 = vmatpush.bf16.msra.mxu0 0
        %1330 = vmatpush.bf16.msra.mxu0 0
        %1331 = vmatpush.bf16.msra.mxu0 %v1202
        %1332 = vmatmul.bf16.gmra.mxu0 %v1186
        %v1333 = vpop.f32.mrf.mxu0
        %v1334 = vadd.f32 %v1321, %v1333
        %v1335 = vpop.f32.mrf.mxu0
        %1336 = vdwg.mxu0
        %1337 = vmatpush.bf16.msra.mxu0 %v1130
        %1338 = vmatpush.bf16.msra.mxu0 %v1124
        %1339 = vmatpush.bf16.msra.mxu0 %v1118
        %1340 = vmatpush.bf16.msra.mxu0 %v1112
        %1341 = vmatpush.bf16.msra.mxu0 %v1106
        %1342 = vmatpush.bf16.msra.mxu0 %v1100
        %1343 = vmatpush.bf16.msra.mxu0 %v1094
        %1344 = vmatpush.bf16.msra.mxu0 %v1088
        %1345 = vmatmul.bf16.gmra.mxu0 %v918
        %v1346 = vpop.f32.mrf.mxu0
        %v1347 = vadd.f32 %v913, %v1346
        %v1348 = vpop.f32.mrf.mxu0
        %1349 = vdwg.mxu0
        %1350 = vmatpush.bf16.msra.mxu0 0
        %1351 = vmatpush.bf16.msra.mxu0 0
        %1352 = vmatpush.bf16.msra.mxu0 0
        %1353 = vmatpush.bf16.msra.mxu0 0
        %1354 = vmatpush.bf16.msra.mxu0 0
        %1355 = vmatpush.bf16.msra.mxu0 0
        %1356 = vmatpush.bf16.msra.mxu0 0
        %1357 = vmatpush.bf16.msra.mxu0 %v1205
        %1358 = vmatmul.bf16.gmra.mxu0 %v1186
        %v1359 = vpop.f32.mrf.mxu0
        %v1360 = vadd.f32 %v1347, %v1359
        %v1361 = vpop.f32.mrf.mxu0
        %1362 = vdwg.mxu0
        %v1363 = vld [vmem:[#allocation6] sm:$0x3f]
        %v1365 = vperm.slane %v1363, 0
        %v1366 = vperm.slane %v1363, 1
        %v1367 = vperm.slane %v1363, 2
        %v1368 = vperm.slane %v1363, 3
        %v1369 = vperm.slane %v1363, 4
        %v1370 = vperm.slane %v1363, 5
        %v1377 = vadd.f32 %v1230, %v1365
        %v1378 = vadd.f32 %v1256, %v1366
        %v1379 = vadd.f32 %v1282, %v1367
        %v1380 = vadd.f32 %v1308, %v1368
        %v1381 = vadd.f32 %v1334, %v1369
        %v1382 = vadd.f32 %v1360, %v1370
        %v1383 = vpack.c.bf16 %v1378, %v1377
        %v1384 = vpack.c.bf16 %v1380, %v1379
        %v1385 = vpack.c.bf16 %v1382, %v1381
        %v1386 = vld [vmem:[#allocation7] sm:$0xff]
        %v1387 = vld [vmem:[#allocation7 + $0x8] sm:$0xff]
        %v1388 = vld [vmem:[#allocation7 + $0x10] sm:$0xff]
        %v1389 = vld [vmem:[#allocation7 + $0x18] sm:$0xff]
        %v1390 = vld [vmem:[#allocation7 + $0x20] sm:$0xff]
        %v1391 = vld [vmem:[#allocation7 + $0x28] sm:$0xff]
        %v1392 = vld [vmem:[#allocation7 + $0x30] sm:$0xff]
        %v1393 = vld [vmem:[#allocation7 + $0x38] sm:$0xff]
        %v1394 = vld [vmem:[#allocation7 + $0x40] sm:$0xff]
        %v1395 = vld [vmem:[#allocation7 + $0x48] sm:$0xff]
        %v1396 = vld [vmem:[#allocation7 + $0x50] sm:$0xff]
        %v1397 = vld [vmem:[#allocation7 + $0x58] sm:$0xff]
        %v1398 = vld [vmem:[#allocation7 + $0x60] sm:$0xff]
        %v1399 = vld [vmem:[#allocation7 + $0x68] sm:$0xff]
        %v1400 = vld [vmem:[#allocation7 + $0x70] sm:$0xff]
        %v1401 = vld [vmem:[#allocation7 + $0x78] sm:$0xff]
        %v1402 = vld [vmem:[#allocation7 + $0x80] sm:$0xff]
        %v1403 = vld [vmem:[#allocation7 + $0x88] sm:$0xff]
        %v1404 = vld [vmem:[#allocation7 + $0x90] sm:$0xff]
        %v1405 = vld [vmem:[#allocation7 + $0x98] sm:$0xff]
        %v1406 = vld [vmem:[#allocation7 + $0xa0] sm:$0xff]
        %v1407 = vld [vmem:[#allocation7 + $0xa8] sm:$0xff]
        %v1408 = vld [vmem:[#allocation7 + $0xb0] sm:$0xff]
        %v1409 = vld [vmem:[#allocation7 + $0xb8] sm:$0xff]
        %v1410 = vld [vmem:[#allocation7 + $0xc0] sm:$0xff]
        %v1411 = vld [vmem:[#allocation7 + $0xc8] sm:$0xff]
        %v1412 = vld [vmem:[#allocation7 + $0xd0] sm:$0xff]
        %v1413 = vld [vmem:[#allocation7 + $0xd8] sm:$0xff]
        %v1414 = vld [vmem:[#allocation7 + $0xe0] sm:$0xff]
        %v1415 = vld [vmem:[#allocation7 + $0xe8] sm:$0xff]
        %v1416 = vld [vmem:[#allocation7 + $0xf0] sm:$0xff]
        %v1417 = vld [vmem:[#allocation7 + $0xf8] sm:$0xff]
        %v1418 = vld [vmem:[#allocation9] sm:$0x3]
        %v1420 = vperm.slane %v1418, 0
        %v1421 = vperm.slane %v1418, 1
        %v1425 = vunpack.c.l.b16 %v1383
        %v1426 = vunpack.c.h.b16 %v1383
        %v1427 = vpack.c.b16 %v1425, %v1425
        %v1428 = vpack.c.b16 %v1426, %v1426
        %v1463 = vunpack.c.l.b16 %v1386
        %v1464 = vunpack.c.h.b16 %v1386
        %v1465 = vunpack.c.l.b16 %v1387
        %v1466 = vunpack.c.h.b16 %v1387
        %v1467 = vunpack.c.l.b16 %v1388
        %v1468 = vunpack.c.h.b16 %v1388
        %v1469 = vunpack.c.l.b16 %v1389
        %v1470 = vunpack.c.h.b16 %v1389
        %v1471 = vunpack.c.l.b16 %v1390
        %v1472 = vunpack.c.h.b16 %v1390
        %v1473 = vunpack.c.l.b16 %v1391
        %v1474 = vunpack.c.h.b16 %v1391
        %v1475 = vunpack.c.l.b16 %v1392
        %v1476 = vunpack.c.h.b16 %v1392
        %v1477 = vunpack.c.l.b16 %v1393
        %v1478 = vunpack.c.h.b16 %v1393
        %v1479 = vunpack.c.l.b16 %v1394
        %v1480 = vunpack.c.h.b16 %v1394
        %v1481 = vunpack.c.l.b16 %v1395
        %v1482 = vunpack.c.h.b16 %v1395
        %v1483 = vunpack.c.l.b16 %v1396
        %v1484 = vunpack.c.h.b16 %v1396
        %v1485 = vunpack.c.l.b16 %v1397
        %v1486 = vunpack.c.h.b16 %v1397
        %v1487 = vunpack.c.l.b16 %v1398
        %v1488 = vunpack.c.h.b16 %v1398
        %v1489 = vunpack.c.l.b16 %v1399
        %v1490 = vunpack.c.h.b16 %v1399
        %v1491 = vunpack.c.l.b16 %v1400
        %v1492 = vunpack.c.h.b16 %v1400
        %v1493 = vunpack.c.l.b16 %v1401
        %v1494 = vunpack.c.h.b16 %v1401
        %v1495 = vunpack.c.l.b16 %v1402
        %v1496 = vunpack.c.h.b16 %v1402
        %v1497 = vunpack.c.l.b16 %v1403
        %v1498 = vunpack.c.h.b16 %v1403
        %v1499 = vunpack.c.l.b16 %v1404
        %v1500 = vunpack.c.h.b16 %v1404
        %v1501 = vunpack.c.l.b16 %v1405
        %v1502 = vunpack.c.h.b16 %v1405
        %v1503 = vunpack.c.l.b16 %v1406
        %v1504 = vunpack.c.h.b16 %v1406
        %v1505 = vunpack.c.l.b16 %v1407
        %v1506 = vunpack.c.h.b16 %v1407
        %v1507 = vunpack.c.l.b16 %v1408
        %v1508 = vunpack.c.h.b16 %v1408
        %v1509 = vunpack.c.l.b16 %v1409
        %v1510 = vunpack.c.h.b16 %v1409
        %v1511 = vunpack.c.l.b16 %v1410
        %v1512 = vunpack.c.h.b16 %v1410
        %v1513 = vunpack.c.l.b16 %v1411
        %v1514 = vunpack.c.h.b16 %v1411
        %v1515 = vunpack.c.l.b16 %v1412
        %v1516 = vunpack.c.h.b16 %v1412
        %v1517 = vunpack.c.l.b16 %v1413
        %v1518 = vunpack.c.h.b16 %v1413
        %v1519 = vunpack.c.l.b16 %v1414
        %v1520 = vunpack.c.h.b16 %v1414
        %v1521 = vunpack.c.l.b16 %v1415
        %v1522 = vunpack.c.h.b16 %v1415
        %v1523 = vunpack.c.l.b16 %v1416
        %v1524 = vunpack.c.h.b16 %v1416
        %v1525 = vunpack.c.l.b16 %v1417
        %v1526 = vunpack.c.h.b16 %v1417
        %v1527 = vpack.c.b16 %v1465, %v1463
        %v1528 = vpack.c.b16 %v1466, %v1464
        %v1529 = vpack.c.b16 %v1469, %v1467
        %v1530 = vpack.c.b16 %v1470, %v1468
        %v1531 = vpack.c.b16 %v1473, %v1471
        %v1532 = vpack.c.b16 %v1474, %v1472
        %v1533 = vpack.c.b16 %v1477, %v1475
        %v1534 = vpack.c.b16 %v1478, %v1476
        %v1535 = vpack.c.b16 %v1481, %v1479
        %v1536 = vpack.c.b16 %v1482, %v1480
        %v1537 = vpack.c.b16 %v1485, %v1483
        %v1538 = vpack.c.b16 %v1486, %v1484
        %v1539 = vpack.c.b16 %v1489, %v1487
        %v1540 = vpack.c.b16 %v1490, %v1488
        %v1541 = vpack.c.b16 %v1493, %v1491
        %v1542 = vpack.c.b16 %v1494, %v1492
        %v1543 = vpack.c.b16 %v1497, %v1495
        %v1544 = vpack.c.b16 %v1498, %v1496
        %v1545 = vpack.c.b16 %v1501, %v1499
        %v1546 = vpack.c.b16 %v1502, %v1500
        %v1547 = vpack.c.b16 %v1505, %v1503
        %v1548 = vpack.c.b16 %v1506, %v1504
        %v1549 = vpack.c.b16 %v1509, %v1507
        %v1550 = vpack.c.b16 %v1510, %v1508
        %v1551 = vpack.c.b16 %v1513, %v1511
        %v1552 = vpack.c.b16 %v1514, %v1512
        %v1553 = vpack.c.b16 %v1517, %v1515
        %v1554 = vpack.c.b16 %v1518, %v1516
        %v1555 = vpack.c.b16 %v1521, %v1519
        %v1556 = vpack.c.b16 %v1522, %v1520
        %v1557 = vpack.c.b16 %v1525, %v1523
        %v1558 = vpack.c.b16 %v1526, %v1524
        %1591 = vmatpush.bf16.msra.mxu0 %v1541
        %1592 = vmatpush.bf16.msra.mxu0 %v1539
        %1593 = vmatpush.bf16.msra.mxu0 %v1537
        %1594 = vmatpush.bf16.msra.mxu0 %v1535
        %1595 = vmatpush.bf16.msra.mxu0 %v1533
        %1596 = vmatpush.bf16.msra.mxu0 %v1531
        %1597 = vmatpush.bf16.msra.mxu0 %v1529
        %1598 = vmatpush.bf16.msra.mxu0 %v1527
        %1599 = vmatmul.bf16.gmra.mxu0 %v1427
        %v1600 = vpop.f32.mrf.mxu0
        %v1601 = vadd.f32 %v1420, %v1600
        %v1602 = vpop.f32.mrf.mxu0
        %1603 = vdwg.mxu0
        %1604 = vmatpush.bf16.msra.mxu0 %v1557
        %1605 = vmatpush.bf16.msra.mxu0 %v1555
        %1606 = vmatpush.bf16.msra.mxu0 %v1553
        %1607 = vmatpush.bf16.msra.mxu0 %v1551
        %1608 = vmatpush.bf16.msra.mxu0 %v1549
        %1609 = vmatpush.bf16.msra.mxu0 %v1547
        %1610 = vmatpush.bf16.msra.mxu0 %v1545
        %1611 = vmatpush.bf16.msra.mxu0 %v1543
        %1612 = vmatmul.bf16.gmra.mxu0 %v1428
        %v1613 = vpop.f32.mrf.mxu0
        %v1614 = vadd.f32 %v1601, %v1613
        %v1615 = vpop.f32.mrf.mxu0
        %1616 = vdwg.mxu0
        %1617 = vmatpush.bf16.msra.mxu0 %v1542
        %1618 = vmatpush.bf16.msra.mxu0 %v1540
        %1619 = vmatpush.bf16.msra.mxu0 %v1538
        %1620 = vmatpush.bf16.msra.mxu0 %v1536
        %1621 = vmatpush.bf16.msra.mxu0 %v1534
        %1622 = vmatpush.bf16.msra.mxu0 %v1532
        %1623 = vmatpush.bf16.msra.mxu0 %v1530
        %1624 = vmatpush.bf16.msra.mxu0 %v1528
        %1625 = vmatmul.bf16.gmra.mxu0 %v1427
        %v1626 = vpop.f32.mrf.mxu0
        %v1627 = vadd.f32 %v1421, %v1626
        %v1628 = vpop.f32.mrf.mxu0
        %1629 = vdwg.mxu0
        %1630 = vmatpush.bf16.msra.mxu0 %v1558
        %1631 = vmatpush.bf16.msra.mxu0 %v1556
        %1632 = vmatpush.bf16.msra.mxu0 %v1554
        %1633 = vmatpush.bf16.msra.mxu0 %v1552
        %1634 = vmatpush.bf16.msra.mxu0 %v1550
        %1635 = vmatpush.bf16.msra.mxu0 %v1548
        %1636 = vmatpush.bf16.msra.mxu0 %v1546
        %1637 = vmatpush.bf16.msra.mxu0 %v1544
        %1638 = vmatmul.bf16.gmra.mxu0 %v1428
        %v1639 = vpop.f32.mrf.mxu0
        %v1640 = vadd.f32 %v1627, %v1639
        %v1641 = vpop.f32.mrf.mxu0
        %1642 = vdwg.mxu0
        %vm1643 = vcmp.gt.f32.partialorder %v1614, 0.0
        %vm1644 = vcmp.gt.f32.partialorder %v1640, 0.0
        %v1645 = vmul.f32 %v1614, 0.01
        %v1646 = vmul.f32 %v1640, 0.01
        %v1647 = vsel %vm1643, %v1614, %v1645
        %v1648 = vsel %vm1644, %v1640, %v1646
        %v1649 = vpack.c.bf16 %v1647, %v1647
        %v1650 = vpack.c.bf16 %v1648, %v1648
        %v1651 = vld [vmem:[#allocation10] sm:$0xf]
        %v1652 = vld [vmem:[#allocation10 + $0x4] sm:$0xf]
        %v1653 = vld [vmem:[#allocation10 + $0x8] sm:$0xf]
        %v1654 = vld [vmem:[#allocation10 + $0xc] sm:$0xf]
        %v1655 = vld [vmem:[#allocation10 + $0x10] sm:$0xf]
        %v1656 = vld [vmem:[#allocation10 + $0x14] sm:$0xf]
        %v1657 = vld [vmem:[#allocation10 + $0x18] sm:$0xf]
        %v1658 = vld [vmem:[#allocation10 + $0x1c] sm:$0xf]
        %v1659 = vld [vmem:[#allocation10 + $0x20] sm:$0xf]
        %v1660 = vld [vmem:[#allocation10 + $0x24] sm:$0xf]
        %v1661 = vld [vmem:[#allocation10 + $0x28] sm:$0xf]
        %v1662 = vld [vmem:[#allocation10 + $0x2c] sm:$0xf]
        %v1663 = vld [vmem:[#allocation10 + $0x30] sm:$0xf]
        %v1664 = vld [vmem:[#allocation10 + $0x34] sm:$0xf]
        %v1665 = vld [vmem:[#allocation10 + $0x38] sm:$0xf]
        %v1666 = vld [vmem:[#allocation10 + $0x3c] sm:$0xf]
        %v1667 = vld [vmem:[#allocation10 + $0x40] sm:$0xf]
        %v1668 = vld [vmem:[#allocation10 + $0x44] sm:$0xf]
        %v1669 = vld [vmem:[#allocation10 + $0x48] sm:$0xf]
        %v1670 = vld [vmem:[#allocation10 + $0x4c] sm:$0xf]
        %v1671 = vld [vmem:[#allocation10 + $0x50] sm:$0xf]
        %v1672 = vld [vmem:[#allocation10 + $0x54] sm:$0xf]
        %v1673 = vld [vmem:[#allocation10 + $0x58] sm:$0xf]
        %v1674 = vld [vmem:[#allocation10 + $0x5c] sm:$0xf]
        %v1675 = vld [vmem:[#allocation10 + $0x60] sm:$0xf]
        %v1676 = vld [vmem:[#allocation10 + $0x64] sm:$0xf]
        %v1677 = vld [vmem:[#allocation10 + $0x68] sm:$0xf]
        %v1678 = vld [vmem:[#allocation10 + $0x6c] sm:$0xf]
        %v1679 = vld [vmem:[#allocation10 + $0x70] sm:$0xf]
        %v1680 = vld [vmem:[#allocation10 + $0x74] sm:$0xf]
        %v1681 = vld [vmem:[#allocation10 + $0x78] sm:$0xf]
        %v1682 = vld [vmem:[#allocation10 + $0x7c] sm:$0xf]
        %v1683 = vld [vmem:[#allocation12] sm:$0x1]
        %v1685 = vperm.slane %v1683, 0
        %v1719 = vunpack.c.l.b16 %v1651
        %v1720 = vunpack.c.l.b16 %v1652
        %v1721 = vunpack.c.l.b16 %v1653
        %v1722 = vunpack.c.l.b16 %v1654
        %v1723 = vunpack.c.l.b16 %v1655
        %v1724 = vunpack.c.l.b16 %v1656
        %v1725 = vunpack.c.l.b16 %v1657
        %v1726 = vunpack.c.l.b16 %v1658
        %v1727 = vunpack.c.l.b16 %v1659
        %v1728 = vunpack.c.l.b16 %v1660
        %v1729 = vunpack.c.l.b16 %v1661
        %v1730 = vunpack.c.l.b16 %v1662
        %v1731 = vunpack.c.l.b16 %v1663
        %v1732 = vunpack.c.l.b16 %v1664
        %v1733 = vunpack.c.l.b16 %v1665
        %v1734 = vunpack.c.l.b16 %v1666
        %v1735 = vunpack.c.l.b16 %v1667
        %v1736 = vunpack.c.l.b16 %v1668
        %v1737 = vunpack.c.l.b16 %v1669
        %v1738 = vunpack.c.l.b16 %v1670
        %v1739 = vunpack.c.l.b16 %v1671
        %v1740 = vunpack.c.l.b16 %v1672
        %v1741 = vunpack.c.l.b16 %v1673
        %v1742 = vunpack.c.l.b16 %v1674
        %v1743 = vunpack.c.l.b16 %v1675
        %v1744 = vunpack.c.l.b16 %v1676
        %v1745 = vunpack.c.l.b16 %v1677
        %v1746 = vunpack.c.l.b16 %v1678
        %v1747 = vunpack.c.l.b16 %v1679
        %v1748 = vunpack.c.l.b16 %v1680
        %v1749 = vunpack.c.l.b16 %v1681
        %v1750 = vunpack.c.l.b16 %v1682
        %v1751 = vpack.c.b16 %v1720, %v1719
        %v1752 = vpack.c.b16 %v1722, %v1721
        %v1753 = vpack.c.b16 %v1724, %v1723
        %v1754 = vpack.c.b16 %v1726, %v1725
        %v1755 = vpack.c.b16 %v1728, %v1727
        %v1756 = vpack.c.b16 %v1730, %v1729
        %v1757 = vpack.c.b16 %v1732, %v1731
        %v1758 = vpack.c.b16 %v1734, %v1733
        %v1759 = vpack.c.b16 %v1736, %v1735
        %v1760 = vpack.c.b16 %v1738, %v1737
        %v1761 = vpack.c.b16 %v1740, %v1739
        %v1762 = vpack.c.b16 %v1742, %v1741
        %v1763 = vpack.c.b16 %v1744, %v1743
        %v1764 = vpack.c.b16 %v1746, %v1745
        %v1765 = vpack.c.b16 %v1748, %v1747
        %v1766 = vpack.c.b16 %v1750, %v1749
        %1783 = vmatpush.bf16.msra.mxu0 %v1758
        %1784 = vmatpush.bf16.msra.mxu0 %v1757
        %1785 = vmatpush.bf16.msra.mxu0 %v1756
        %1786 = vmatpush.bf16.msra.mxu0 %v1755
        %1787 = vmatpush.bf16.msra.mxu0 %v1754
        %1788 = vmatpush.bf16.msra.mxu0 %v1753
        %1789 = vmatpush.bf16.msra.mxu0 %v1752
        %1790 = vmatpush.bf16.msra.mxu0 %v1751
        %1791 = vmatmul.bf16.gmra.mxu0 %v1649
        %v1792 = vpop.f32.mrf.mxu0
        %v1793 = vadd.f32 %v1685, %v1792
        %v1794 = vpop.f32.mrf.mxu0
        %1795 = vdwg.mxu0
        %1796 = vmatpush.bf16.msra.mxu0 %v1766
        %1797 = vmatpush.bf16.msra.mxu0 %v1765
        %1798 = vmatpush.bf16.msra.mxu0 %v1764
        %1799 = vmatpush.bf16.msra.mxu0 %v1763
        %1800 = vmatpush.bf16.msra.mxu0 %v1762
        %1801 = vmatpush.bf16.msra.mxu0 %v1761
        %1802 = vmatpush.bf16.msra.mxu0 %v1760
        %1803 = vmatpush.bf16.msra.mxu0 %v1759
        %1804 = vmatmul.bf16.gmra.mxu0 %v1650
        %v1805 = vpop.f32.mrf.mxu0
        %v1806 = vadd.f32 %v1793, %v1805
        %v1807 = vpop.f32.mrf.mxu0
        %1808 = vdwg.mxu0
        %v1809 = vpack.c.bf16 %v1806, %v1806
        %1810 = vst [vmem:[%s491] sm:$0x1] %v1809
        %s1811 = scalar_lea.vmem [#allocation7], 256
        %v1812 = vld [vmem:[%s1811] sm:$0xff]
        %v1813 = vld [vmem:[%s1811 + $0x8] sm:$0xff]
        %v1814 = vld [vmem:[%s1811 + $0x10] sm:$0xff]
        %v1815 = vld [vmem:[%s1811 + $0x18] sm:$0xff]
        %v1816 = vld [vmem:[%s1811 + $0x20] sm:$0xff]
        %v1817 = vld [vmem:[%s1811 + $0x28] sm:$0xff]
        %v1818 = vld [vmem:[%s1811 + $0x30] sm:$0xff]
        %v1819 = vld [vmem:[%s1811 + $0x38] sm:$0xff]
        %v1820 = vld [vmem:[%s1811 + $0x40] sm:$0xff]
        %v1821 = vld [vmem:[%s1811 + $0x48] sm:$0xff]
        %v1822 = vld [vmem:[%s1811 + $0x50] sm:$0xff]
        %v1823 = vld [vmem:[%s1811 + $0x58] sm:$0xff]
        %v1824 = vld [vmem:[%s1811 + $0x60] sm:$0xff]
        %v1825 = vld [vmem:[%s1811 + $0x68] sm:$0xff]
        %v1826 = vld [vmem:[%s1811 + $0x70] sm:$0xff]
        %v1827 = vld [vmem:[%s1811 + $0x78] sm:$0xff]
        %v1828 = vld [vmem:[%s1811 + $0x80] sm:$0xff]
        %v1829 = vld [vmem:[%s1811 + $0x88] sm:$0xff]
        %v1830 = vld [vmem:[%s1811 + $0x90] sm:$0xff]
        %v1831 = vld [vmem:[%s1811 + $0x98] sm:$0xff]
        %v1832 = vld [vmem:[%s1811 + $0xa0] sm:$0xff]
        %v1833 = vld [vmem:[%s1811 + $0xa8] sm:$0xff]
        %v1834 = vld [vmem:[%s1811 + $0xb0] sm:$0xff]
        %v1835 = vld [vmem:[%s1811 + $0xb8] sm:$0xff]
        %v1836 = vld [vmem:[%s1811 + $0xc0] sm:$0xff]
        %v1837 = vld [vmem:[%s1811 + $0xc8] sm:$0xff]
        %v1838 = vld [vmem:[%s1811 + $0xd0] sm:$0xff]
        %v1839 = vld [vmem:[%s1811 + $0xd8] sm:$0xff]
        %v1840 = vld [vmem:[%s1811 + $0xe0] sm:$0xff]
        %v1841 = vld [vmem:[%s1811 + $0xe8] sm:$0xff]
        %v1842 = vld [vmem:[%s1811 + $0xf0] sm:$0xff]
        %v1843 = vld [vmem:[%s1811 + $0xf8] sm:$0xff]
        %s1844 = scalar_lea.vmem [#allocation9], 2
        %v1845 = vld [vmem:[%s1844] sm:$0x3]
        %v1847 = vperm.slane %v1845, 0
        %v1848 = vperm.slane %v1845, 1
        %v1852 = vunpack.c.l.b16 %v1384
        %v1853 = vunpack.c.h.b16 %v1384
        %v1854 = vpack.c.b16 %v1852, %v1852
        %v1855 = vpack.c.b16 %v1853, %v1853
        %v1890 = vunpack.c.l.b16 %v1812
        %v1891 = vunpack.c.h.b16 %v1812
        %v1892 = vunpack.c.l.b16 %v1813
        %v1893 = vunpack.c.h.b16 %v1813
        %v1894 = vunpack.c.l.b16 %v1814
        %v1895 = vunpack.c.h.b16 %v1814
        %v1896 = vunpack.c.l.b16 %v1815
        %v1897 = vunpack.c.h.b16 %v1815
        %v1898 = vunpack.c.l.b16 %v1816
        %v1899 = vunpack.c.h.b16 %v1816
        %v1900 = vunpack.c.l.b16 %v1817
        %v1901 = vunpack.c.h.b16 %v1817
        %v1902 = vunpack.c.l.b16 %v1818
        %v1903 = vunpack.c.h.b16 %v1818
        %v1904 = vunpack.c.l.b16 %v1819
        %v1905 = vunpack.c.h.b16 %v1819
        %v1906 = vunpack.c.l.b16 %v1820
        %v1907 = vunpack.c.h.b16 %v1820
        %v1908 = vunpack.c.l.b16 %v1821
        %v1909 = vunpack.c.h.b16 %v1821
        %v1910 = vunpack.c.l.b16 %v1822
        %v1911 = vunpack.c.h.b16 %v1822
        %v1912 = vunpack.c.l.b16 %v1823
        %v1913 = vunpack.c.h.b16 %v1823
        %v1914 = vunpack.c.l.b16 %v1824
        %v1915 = vunpack.c.h.b16 %v1824
        %v1916 = vunpack.c.l.b16 %v1825
        %v1917 = vunpack.c.h.b16 %v1825
        %v1918 = vunpack.c.l.b16 %v1826
        %v1919 = vunpack.c.h.b16 %v1826
        %v1920 = vunpack.c.l.b16 %v1827
        %v1921 = vunpack.c.h.b16 %v1827
        %v1922 = vunpack.c.l.b16 %v1828
        %v1923 = vunpack.c.h.b16 %v1828
        %v1924 = vunpack.c.l.b16 %v1829
        %v1925 = vunpack.c.h.b16 %v1829
        %v1926 = vunpack.c.l.b16 %v1830
        %v1927 = vunpack.c.h.b16 %v1830
        %v1928 = vunpack.c.l.b16 %v1831
        %v1929 = vunpack.c.h.b16 %v1831
        %v1930 = vunpack.c.l.b16 %v1832
        %v1931 = vunpack.c.h.b16 %v1832
        %v1932 = vunpack.c.l.b16 %v1833
        %v1933 = vunpack.c.h.b16 %v1833
        %v1934 = vunpack.c.l.b16 %v1834
        %v1935 = vunpack.c.h.b16 %v1834
        %v1936 = vunpack.c.l.b16 %v1835
        %v1937 = vunpack.c.h.b16 %v1835
        %v1938 = vunpack.c.l.b16 %v1836
        %v1939 = vunpack.c.h.b16 %v1836
        %v1940 = vunpack.c.l.b16 %v1837
        %v1941 = vunpack.c.h.b16 %v1837
        %v1942 = vunpack.c.l.b16 %v1838
        %v1943 = vunpack.c.h.b16 %v1838
        %v1944 = vunpack.c.l.b16 %v1839
        %v1945 = vunpack.c.h.b16 %v1839
        %v1946 = vunpack.c.l.b16 %v1840
        %v1947 = vunpack.c.h.b16 %v1840
        %v1948 = vunpack.c.l.b16 %v1841
        %v1949 = vunpack.c.h.b16 %v1841
        %v1950 = vunpack.c.l.b16 %v1842
        %v1951 = vunpack.c.h.b16 %v1842
        %v1952 = vunpack.c.l.b16 %v1843
        %v1953 = vunpack.c.h.b16 %v1843
        %v1954 = vpack.c.b16 %v1892, %v1890
        %v1955 = vpack.c.b16 %v1893, %v1891
        %v1956 = vpack.c.b16 %v1896, %v1894
        %v1957 = vpack.c.b16 %v1897, %v1895
        %v1958 = vpack.c.b16 %v1900, %v1898
        %v1959 = vpack.c.b16 %v1901, %v1899
        %v1960 = vpack.c.b16 %v1904, %v1902
        %v1961 = vpack.c.b16 %v1905, %v1903
        %v1962 = vpack.c.b16 %v1908, %v1906
        %v1963 = vpack.c.b16 %v1909, %v1907
        %v1964 = vpack.c.b16 %v1912, %v1910
        %v1965 = vpack.c.b16 %v1913, %v1911
        %v1966 = vpack.c.b16 %v1916, %v1914
        %v1967 = vpack.c.b16 %v1917, %v1915
        %v1968 = vpack.c.b16 %v1920, %v1918
        %v1969 = vpack.c.b16 %v1921, %v1919
        %v1970 = vpack.c.b16 %v1924, %v1922
        %v1971 = vpack.c.b16 %v1925, %v1923
        %v1972 = vpack.c.b16 %v1928, %v1926
        %v1973 = vpack.c.b16 %v1929, %v1927
        %v1974 = vpack.c.b16 %v1932, %v1930
        %v1975 = vpack.c.b16 %v1933, %v1931
        %v1976 = vpack.c.b16 %v1936, %v1934
        %v1977 = vpack.c.b16 %v1937, %v1935
        %v1978 = vpack.c.b16 %v1940, %v1938
        %v1979 = vpack.c.b16 %v1941, %v1939
        %v1980 = vpack.c.b16 %v1944, %v1942
        %v1981 = vpack.c.b16 %v1945, %v1943
        %v1982 = vpack.c.b16 %v1948, %v1946
        %v1983 = vpack.c.b16 %v1949, %v1947
        %v1984 = vpack.c.b16 %v1952, %v1950
        %v1985 = vpack.c.b16 %v1953, %v1951
        %2018 = vmatpush.bf16.msra.mxu0 %v1968
        %2019 = vmatpush.bf16.msra.mxu0 %v1966
        %2020 = vmatpush.bf16.msra.mxu0 %v1964
        %2021 = vmatpush.bf16.msra.mxu0 %v1962
        %2022 = vmatpush.bf16.msra.mxu0 %v1960
        %2023 = vmatpush.bf16.msra.mxu0 %v1958
        %2024 = vmatpush.bf16.msra.mxu0 %v1956
        %2025 = vmatpush.bf16.msra.mxu0 %v1954
        %2026 = vmatmul.bf16.gmra.mxu0 %v1854
        %v2027 = vpop.f32.mrf.mxu0
        %v2028 = vadd.f32 %v1847, %v2027
        %v2029 = vpop.f32.mrf.mxu0
        %2030 = vdwg.mxu0
        %2031 = vmatpush.bf16.msra.mxu0 %v1984
        %2032 = vmatpush.bf16.msra.mxu0 %v1982
        %2033 = vmatpush.bf16.msra.mxu0 %v1980
        %2034 = vmatpush.bf16.msra.mxu0 %v1978
        %2035 = vmatpush.bf16.msra.mxu0 %v1976
        %2036 = vmatpush.bf16.msra.mxu0 %v1974
        %2037 = vmatpush.bf16.msra.mxu0 %v1972
        %2038 = vmatpush.bf16.msra.mxu0 %v1970
        %2039 = vmatmul.bf16.gmra.mxu0 %v1855
        %v2040 = vpop.f32.mrf.mxu0
        %v2041 = vadd.f32 %v2028, %v2040
        %v2042 = vpop.f32.mrf.mxu0
        %2043 = vdwg.mxu0
        %2044 = vmatpush.bf16.msra.mxu0 %v1969
        %2045 = vmatpush.bf16.msra.mxu0 %v1967
        %2046 = vmatpush.bf16.msra.mxu0 %v1965
        %2047 = vmatpush.bf16.msra.mxu0 %v1963
        %2048 = vmatpush.bf16.msra.mxu0 %v1961
        %2049 = vmatpush.bf16.msra.mxu0 %v1959
        %2050 = vmatpush.bf16.msra.mxu0 %v1957
        %2051 = vmatpush.bf16.msra.mxu0 %v1955
        %2052 = vmatmul.bf16.gmra.mxu0 %v1854
        %v2053 = vpop.f32.mrf.mxu0
        %v2054 = vadd.f32 %v1848, %v2053
        %v2055 = vpop.f32.mrf.mxu0
        %2056 = vdwg.mxu0
        %2057 = vmatpush.bf16.msra.mxu0 %v1985
        %2058 = vmatpush.bf16.msra.mxu0 %v1983
        %2059 = vmatpush.bf16.msra.mxu0 %v1981
        %2060 = vmatpush.bf16.msra.mxu0 %v1979
        %2061 = vmatpush.bf16.msra.mxu0 %v1977
        %2062 = vmatpush.bf16.msra.mxu0 %v1975
        %2063 = vmatpush.bf16.msra.mxu0 %v1973
        %2064 = vmatpush.bf16.msra.mxu0 %v1971
        %2065 = vmatmul.bf16.gmra.mxu0 %v1855
        %v2066 = vpop.f32.mrf.mxu0
        %v2067 = vadd.f32 %v2054, %v2066
        %v2068 = vpop.f32.mrf.mxu0
        %2069 = vdwg.mxu0
        %vm2070 = vcmp.gt.f32.partialorder %v2041, 0.0
        %vm2071 = vcmp.gt.f32.partialorder %v2067, 0.0
        %v2072 = vmul.f32 %v2041, 0.01
        %v2073 = vmul.f32 %v2067, 0.01
        %v2074 = vsel %vm2070, %v2041, %v2072
        %v2075 = vsel %vm2071, %v2067, %v2073
        %v2076 = vpack.c.bf16 %v2074, %v2074
        %v2077 = vpack.c.bf16 %v2075, %v2075
        %s2078 = scalar_lea.vmem [#allocation10], 128
        %v2079 = vld [vmem:[%s2078] sm:$0xf]
        %v2080 = vld [vmem:[%s2078 + $0x4] sm:$0xf]
        %v2081 = vld [vmem:[%s2078 + $0x8] sm:$0xf]
        %v2082 = vld [vmem:[%s2078 + $0xc] sm:$0xf]
        %v2083 = vld [vmem:[%s2078 + $0x10] sm:$0xf]
        %v2084 = vld [vmem:[%s2078 + $0x14] sm:$0xf]
        %v2085 = vld [vmem:[%s2078 + $0x18] sm:$0xf]
        %v2086 = vld [vmem:[%s2078 + $0x1c] sm:$0xf]
        %v2087 = vld [vmem:[%s2078 + $0x20] sm:$0xf]
        %v2088 = vld [vmem:[%s2078 + $0x24] sm:$0xf]
        %v2089 = vld [vmem:[%s2078 + $0x28] sm:$0xf]
        %v2090 = vld [vmem:[%s2078 + $0x2c] sm:$0xf]
        %v2091 = vld [vmem:[%s2078 + $0x30] sm:$0xf]
        %v2092 = vld [vmem:[%s2078 + $0x34] sm:$0xf]
        %v2093 = vld [vmem:[%s2078 + $0x38] sm:$0xf]
        %v2094 = vld [vmem:[%s2078 + $0x3c] sm:$0xf]
        %v2095 = vld [vmem:[%s2078 + $0x40] sm:$0xf]
        %v2096 = vld [vmem:[%s2078 + $0x44] sm:$0xf]
        %v2097 = vld [vmem:[%s2078 + $0x48] sm:$0xf]
        %v2098 = vld [vmem:[%s2078 + $0x4c] sm:$0xf]
        %v2099 = vld [vmem:[%s2078 + $0x50] sm:$0xf]
        %v2100 = vld [vmem:[%s2078 + $0x54] sm:$0xf]
        %v2101 = vld [vmem:[%s2078 + $0x58] sm:$0xf]
        %v2102 = vld [vmem:[%s2078 + $0x5c] sm:$0xf]
        %v2103 = vld [vmem:[%s2078 + $0x60] sm:$0xf]
        %v2104 = vld [vmem:[%s2078 + $0x64] sm:$0xf]
        %v2105 = vld [vmem:[%s2078 + $0x68] sm:$0xf]
        %v2106 = vld [vmem:[%s2078 + $0x6c] sm:$0xf]
        %v2107 = vld [vmem:[%s2078 + $0x70] sm:$0xf]
        %v2108 = vld [vmem:[%s2078 + $0x74] sm:$0xf]
        %v2109 = vld [vmem:[%s2078 + $0x78] sm:$0xf]
        %v2110 = vld [vmem:[%s2078 + $0x7c] sm:$0xf]
        %s2111 = scalar_lea.vmem [#allocation12], 1
        %v2112 = vld [vmem:[%s2111] sm:$0x1]
        %v2114 = vperm.slane %v2112, 0
        %v2148 = vunpack.c.l.b16 %v2079
        %v2149 = vunpack.c.l.b16 %v2080
        %v2150 = vunpack.c.l.b16 %v2081
        %v2151 = vunpack.c.l.b16 %v2082
        %v2152 = vunpack.c.l.b16 %v2083
        %v2153 = vunpack.c.l.b16 %v2084
        %v2154 = vunpack.c.l.b16 %v2085
        %v2155 = vunpack.c.l.b16 %v2086
        %v2156 = vunpack.c.l.b16 %v2087
        %v2157 = vunpack.c.l.b16 %v2088
        %v2158 = vunpack.c.l.b16 %v2089
        %v2159 = vunpack.c.l.b16 %v2090
        %v2160 = vunpack.c.l.b16 %v2091
        %v2161 = vunpack.c.l.b16 %v2092
        %v2162 = vunpack.c.l.b16 %v2093
        %v2163 = vunpack.c.l.b16 %v2094
        %v2164 = vunpack.c.l.b16 %v2095
        %v2165 = vunpack.c.l.b16 %v2096
        %v2166 = vunpack.c.l.b16 %v2097
        %v2167 = vunpack.c.l.b16 %v2098
        %v2168 = vunpack.c.l.b16 %v2099
        %v2169 = vunpack.c.l.b16 %v2100
        %v2170 = vunpack.c.l.b16 %v2101
        %v2171 = vunpack.c.l.b16 %v2102
        %v2172 = vunpack.c.l.b16 %v2103
        %v2173 = vunpack.c.l.b16 %v2104
        %v2174 = vunpack.c.l.b16 %v2105
        %v2175 = vunpack.c.l.b16 %v2106
        %v2176 = vunpack.c.l.b16 %v2107
        %v2177 = vunpack.c.l.b16 %v2108
        %v2178 = vunpack.c.l.b16 %v2109
        %v2179 = vunpack.c.l.b16 %v2110
        %v2180 = vpack.c.b16 %v2149, %v2148
        %v2181 = vpack.c.b16 %v2151, %v2150
        %v2182 = vpack.c.b16 %v2153, %v2152
        %v2183 = vpack.c.b16 %v2155, %v2154
        %v2184 = vpack.c.b16 %v2157, %v2156
        %v2185 = vpack.c.b16 %v2159, %v2158
        %v2186 = vpack.c.b16 %v2161, %v2160
        %v2187 = vpack.c.b16 %v2163, %v2162
        %v2188 = vpack.c.b16 %v2165, %v2164
        %v2189 = vpack.c.b16 %v2167, %v2166
        %v2190 = vpack.c.b16 %v2169, %v2168
        %v2191 = vpack.c.b16 %v2171, %v2170
        %v2192 = vpack.c.b16 %v2173, %v2172
        %v2193 = vpack.c.b16 %v2175, %v2174
        %v2194 = vpack.c.b16 %v2177, %v2176
        %v2195 = vpack.c.b16 %v2179, %v2178
        %2212 = vmatpush.bf16.msra.mxu0 %v2187
        %2213 = vmatpush.bf16.msra.mxu0 %v2186
        %2214 = vmatpush.bf16.msra.mxu0 %v2185
        %2215 = vmatpush.bf16.msra.mxu0 %v2184
        %2216 = vmatpush.bf16.msra.mxu0 %v2183
        %2217 = vmatpush.bf16.msra.mxu0 %v2182
        %2218 = vmatpush.bf16.msra.mxu0 %v2181
        %2219 = vmatpush.bf16.msra.mxu0 %v2180
        %2220 = vmatmul.bf16.gmra.mxu0 %v2076
        %v2221 = vpop.f32.mrf.mxu0
        %v2222 = vadd.f32 %v2114, %v2221
        %v2223 = vpop.f32.mrf.mxu0
        %2224 = vdwg.mxu0
        %2225 = vmatpush.bf16.msra.mxu0 %v2195
        %2226 = vmatpush.bf16.msra.mxu0 %v2194
        %2227 = vmatpush.bf16.msra.mxu0 %v2193
        %2228 = vmatpush.bf16.msra.mxu0 %v2192
        %2229 = vmatpush.bf16.msra.mxu0 %v2191
        %2230 = vmatpush.bf16.msra.mxu0 %v2190
        %2231 = vmatpush.bf16.msra.mxu0 %v2189
        %2232 = vmatpush.bf16.msra.mxu0 %v2188
        %2233 = vmatmul.bf16.gmra.mxu0 %v2077
        %v2234 = vpop.f32.mrf.mxu0
        %v2235 = vadd.f32 %v2222, %v2234
        %v2236 = vpop.f32.mrf.mxu0
        %2237 = vdwg.mxu0
        %v2238 = vpack.c.bf16 %v2235, %v2235
        %2239 = vst [vmem:[%s491 + $0x1] sm:$0x1] %v2238
        %s2240 = scalar_lea.vmem [#allocation7], 512
        %v2241 = vld [vmem:[%s2240] sm:$0xff]
        %v2242 = vld [vmem:[%s2240 + $0x8] sm:$0xff]
        %v2243 = vld [vmem:[%s2240 + $0x10] sm:$0xff]
        %v2244 = vld [vmem:[%s2240 + $0x18] sm:$0xff]
        %v2245 = vld [vmem:[%s2240 + $0x20] sm:$0xff]
        %v2246 = vld [vmem:[%s2240 + $0x28] sm:$0xff]
        %v2247 = vld [vmem:[%s2240 + $0x30] sm:$0xff]
        %v2248 = vld [vmem:[%s2240 + $0x38] sm:$0xff]
        %v2249 = vld [vmem:[%s2240 + $0x40] sm:$0xff]
        %v2250 = vld [vmem:[%s2240 + $0x48] sm:$0xff]
        %v2251 = vld [vmem:[%s2240 + $0x50] sm:$0xff]
        %v2252 = vld [vmem:[%s2240 + $0x58] sm:$0xff]
        %v2253 = vld [vmem:[%s2240 + $0x60] sm:$0xff]
        %v2254 = vld [vmem:[%s2240 + $0x68] sm:$0xff]
        %v2255 = vld [vmem:[%s2240 + $0x70] sm:$0xff]
        %v2256 = vld [vmem:[%s2240 + $0x78] sm:$0xff]
        %v2257 = vld [vmem:[%s2240 + $0x80] sm:$0xff]
        %v2258 = vld [vmem:[%s2240 + $0x88] sm:$0xff]
        %v2259 = vld [vmem:[%s2240 + $0x90] sm:$0xff]
        %v2260 = vld [vmem:[%s2240 + $0x98] sm:$0xff]
        %v2261 = vld [vmem:[%s2240 + $0xa0] sm:$0xff]
        %v2262 = vld [vmem:[%s2240 + $0xa8] sm:$0xff]
        %v2263 = vld [vmem:[%s2240 + $0xb0] sm:$0xff]
        %v2264 = vld [vmem:[%s2240 + $0xb8] sm:$0xff]
        %v2265 = vld [vmem:[%s2240 + $0xc0] sm:$0xff]
        %v2266 = vld [vmem:[%s2240 + $0xc8] sm:$0xff]
        %v2267 = vld [vmem:[%s2240 + $0xd0] sm:$0xff]
        %v2268 = vld [vmem:[%s2240 + $0xd8] sm:$0xff]
        %v2269 = vld [vmem:[%s2240 + $0xe0] sm:$0xff]
        %v2270 = vld [vmem:[%s2240 + $0xe8] sm:$0xff]
        %v2271 = vld [vmem:[%s2240 + $0xf0] sm:$0xff]
        %v2272 = vld [vmem:[%s2240 + $0xf8] sm:$0xff]
        %s2273 = scalar_lea.vmem [#allocation9], 4
        %v2274 = vld [vmem:[%s2273] sm:$0x3]
        %v2276 = vperm.slane %v2274, 0
        %v2277 = vperm.slane %v2274, 1
        %v2281 = vunpack.c.l.b16 %v1385
        %v2282 = vunpack.c.h.b16 %v1385
        %v2283 = vpack.c.b16 %v2281, %v2281
        %v2284 = vpack.c.b16 %v2282, %v2282
        %v2319 = vunpack.c.l.b16 %v2241
        %v2320 = vunpack.c.h.b16 %v2241
        %v2321 = vunpack.c.l.b16 %v2242
        %v2322 = vunpack.c.h.b16 %v2242
        %v2323 = vunpack.c.l.b16 %v2243
        %v2324 = vunpack.c.h.b16 %v2243
        %v2325 = vunpack.c.l.b16 %v2244
        %v2326 = vunpack.c.h.b16 %v2244
        %v2327 = vunpack.c.l.b16 %v2245
        %v2328 = vunpack.c.h.b16 %v2245
        %v2329 = vunpack.c.l.b16 %v2246
        %v2330 = vunpack.c.h.b16 %v2246
        %v2331 = vunpack.c.l.b16 %v2247
        %v2332 = vunpack.c.h.b16 %v2247
        %v2333 = vunpack.c.l.b16 %v2248
        %v2334 = vunpack.c.h.b16 %v2248
        %v2335 = vunpack.c.l.b16 %v2249
        %v2336 = vunpack.c.h.b16 %v2249
        %v2337 = vunpack.c.l.b16 %v2250
        %v2338 = vunpack.c.h.b16 %v2250
        %v2339 = vunpack.c.l.b16 %v2251
        %v2340 = vunpack.c.h.b16 %v2251
        %v2341 = vunpack.c.l.b16 %v2252
        %v2342 = vunpack.c.h.b16 %v2252
        %v2343 = vunpack.c.l.b16 %v2253
        %v2344 = vunpack.c.h.b16 %v2253
        %v2345 = vunpack.c.l.b16 %v2254
        %v2346 = vunpack.c.h.b16 %v2254
        %v2347 = vunpack.c.l.b16 %v2255
        %v2348 = vunpack.c.h.b16 %v2255
        %v2349 = vunpack.c.l.b16 %v2256
        %v2350 = vunpack.c.h.b16 %v2256
        %v2351 = vunpack.c.l.b16 %v2257
        %v2352 = vunpack.c.h.b16 %v2257
        %v2353 = vunpack.c.l.b16 %v2258
        %v2354 = vunpack.c.h.b16 %v2258
        %v2355 = vunpack.c.l.b16 %v2259
        %v2356 = vunpack.c.h.b16 %v2259
        %v2357 = vunpack.c.l.b16 %v2260
        %v2358 = vunpack.c.h.b16 %v2260
        %v2359 = vunpack.c.l.b16 %v2261
        %v2360 = vunpack.c.h.b16 %v2261
        %v2361 = vunpack.c.l.b16 %v2262
        %v2362 = vunpack.c.h.b16 %v2262
        %v2363 = vunpack.c.l.b16 %v2263
        %v2364 = vunpack.c.h.b16 %v2263
        %v2365 = vunpack.c.l.b16 %v2264
        %v2366 = vunpack.c.h.b16 %v2264
        %v2367 = vunpack.c.l.b16 %v2265
        %v2368 = vunpack.c.h.b16 %v2265
        %v2369 = vunpack.c.l.b16 %v2266
        %v2370 = vunpack.c.h.b16 %v2266
        %v2371 = vunpack.c.l.b16 %v2267
        %v2372 = vunpack.c.h.b16 %v2267
        %v2373 = vunpack.c.l.b16 %v2268
        %v2374 = vunpack.c.h.b16 %v2268
        %v2375 = vunpack.c.l.b16 %v2269
        %v2376 = vunpack.c.h.b16 %v2269
        %v2377 = vunpack.c.l.b16 %v2270
        %v2378 = vunpack.c.h.b16 %v2270
        %v2379 = vunpack.c.l.b16 %v2271
        %v2380 = vunpack.c.h.b16 %v2271
        %v2381 = vunpack.c.l.b16 %v2272
        %v2382 = vunpack.c.h.b16 %v2272
        %v2383 = vpack.c.b16 %v2321, %v2319
        %v2384 = vpack.c.b16 %v2322, %v2320
        %v2385 = vpack.c.b16 %v2325, %v2323
        %v2386 = vpack.c.b16 %v2326, %v2324
        %v2387 = vpack.c.b16 %v2329, %v2327
        %v2388 = vpack.c.b16 %v2330, %v2328
        %v2389 = vpack.c.b16 %v2333, %v2331
        %v2390 = vpack.c.b16 %v2334, %v2332
        %v2391 = vpack.c.b16 %v2337, %v2335
        %v2392 = vpack.c.b16 %v2338, %v2336
        %v2393 = vpack.c.b16 %v2341, %v2339
        %v2394 = vpack.c.b16 %v2342, %v2340
        %v2395 = vpack.c.b16 %v2345, %v2343
        %v2396 = vpack.c.b16 %v2346, %v2344
        %v2397 = vpack.c.b16 %v2349, %v2347
        %v2398 = vpack.c.b16 %v2350, %v2348
        %v2399 = vpack.c.b16 %v2353, %v2351
        %v2400 = vpack.c.b16 %v2354, %v2352
        %v2401 = vpack.c.b16 %v2357, %v2355
        %v2402 = vpack.c.b16 %v2358, %v2356
        %v2403 = vpack.c.b16 %v2361, %v2359
        %v2404 = vpack.c.b16 %v2362, %v2360
        %v2405 = vpack.c.b16 %v2365, %v2363
        %v2406 = vpack.c.b16 %v2366, %v2364
        %v2407 = vpack.c.b16 %v2369, %v2367
        %v2408 = vpack.c.b16 %v2370, %v2368
        %v2409 = vpack.c.b16 %v2373, %v2371
        %v2410 = vpack.c.b16 %v2374, %v2372
        %v2411 = vpack.c.b16 %v2377, %v2375
        %v2412 = vpack.c.b16 %v2378, %v2376
        %v2413 = vpack.c.b16 %v2381, %v2379
        %v2414 = vpack.c.b16 %v2382, %v2380
        %2447 = vmatpush.bf16.msra.mxu0 %v2397
        %2448 = vmatpush.bf16.msra.mxu0 %v2395
        %2449 = vmatpush.bf16.msra.mxu0 %v2393
        %2450 = vmatpush.bf16.msra.mxu0 %v2391
        %2451 = vmatpush.bf16.msra.mxu0 %v2389
        %2452 = vmatpush.bf16.msra.mxu0 %v2387
        %2453 = vmatpush.bf16.msra.mxu0 %v2385
        %2454 = vmatpush.bf16.msra.mxu0 %v2383
        %2455 = vmatmul.bf16.gmra.mxu0 %v2283
        %v2456 = vpop.f32.mrf.mxu0
        %v2457 = vadd.f32 %v2276, %v2456
        %v2458 = vpop.f32.mrf.mxu0
        %2459 = vdwg.mxu0
        %2460 = vmatpush.bf16.msra.mxu0 %v2413
        %2461 = vmatpush.bf16.msra.mxu0 %v2411
        %2462 = vmatpush.bf16.msra.mxu0 %v2409
        %2463 = vmatpush.bf16.msra.mxu0 %v2407
        %2464 = vmatpush.bf16.msra.mxu0 %v2405
        %2465 = vmatpush.bf16.msra.mxu0 %v2403
        %2466 = vmatpush.bf16.msra.mxu0 %v2401
        %2467 = vmatpush.bf16.msra.mxu0 %v2399
        %2468 = vmatmul.bf16.gmra.mxu0 %v2284
        %v2469 = vpop.f32.mrf.mxu0
        %v2470 = vadd.f32 %v2457, %v2469
        %v2471 = vpop.f32.mrf.mxu0
        %2472 = vdwg.mxu0
        %2473 = vmatpush.bf16.msra.mxu0 %v2398
        %2474 = vmatpush.bf16.msra.mxu0 %v2396
        %2475 = vmatpush.bf16.msra.mxu0 %v2394
        %2476 = vmatpush.bf16.msra.mxu0 %v2392
        %2477 = vmatpush.bf16.msra.mxu0 %v2390
        %2478 = vmatpush.bf16.msra.mxu0 %v2388
        %2479 = vmatpush.bf16.msra.mxu0 %v2386
        %2480 = vmatpush.bf16.msra.mxu0 %v2384
        %2481 = vmatmul.bf16.gmra.mxu0 %v2283
        %v2482 = vpop.f32.mrf.mxu0
        %v2483 = vadd.f32 %v2277, %v2482
        %v2484 = vpop.f32.mrf.mxu0
        %2485 = vdwg.mxu0
        %2486 = vmatpush.bf16.msra.mxu0 %v2414
        %2487 = vmatpush.bf16.msra.mxu0 %v2412
        %2488 = vmatpush.bf16.msra.mxu0 %v2410
        %2489 = vmatpush.bf16.msra.mxu0 %v2408
        %2490 = vmatpush.bf16.msra.mxu0 %v2406
        %2491 = vmatpush.bf16.msra.mxu0 %v2404
        %2492 = vmatpush.bf16.msra.mxu0 %v2402
        %2493 = vmatpush.bf16.msra.mxu0 %v2400
        %2494 = vmatmul.bf16.gmra.mxu0 %v2284
        %v2495 = vpop.f32.mrf.mxu0
        %v2496 = vadd.f32 %v2483, %v2495
        %v2497 = vpop.f32.mrf.mxu0
        %2498 = vdwg.mxu0
        %vm2499 = vcmp.gt.f32.partialorder %v2470, 0.0
        %vm2500 = vcmp.gt.f32.partialorder %v2496, 0.0
        %v2501 = vmul.f32 %v2470, 0.01
        %v2502 = vmul.f32 %v2496, 0.01
        %v2503 = vsel %vm2499, %v2470, %v2501
        %v2504 = vsel %vm2500, %v2496, %v2502
        %v2505 = vpack.c.bf16 %v2503, %v2503
        %v2506 = vpack.c.bf16 %v2504, %v2504
        %s2507 = scalar_lea.vmem [#allocation10], 256
        %v2508 = vld [vmem:[%s2507] sm:$0xf]
        %v2509 = vld [vmem:[%s2507 + $0x4] sm:$0xf]
        %v2510 = vld [vmem:[%s2507 + $0x8] sm:$0xf]
        %v2511 = vld [vmem:[%s2507 + $0xc] sm:$0xf]
        %v2512 = vld [vmem:[%s2507 + $0x10] sm:$0xf]
        %v2513 = vld [vmem:[%s2507 + $0x14] sm:$0xf]
        %v2514 = vld [vmem:[%s2507 + $0x18] sm:$0xf]
        %v2515 = vld [vmem:[%s2507 + $0x1c] sm:$0xf]
        %v2516 = vld [vmem:[%s2507 + $0x20] sm:$0xf]
        %v2517 = vld [vmem:[%s2507 + $0x24] sm:$0xf]
        %v2518 = vld [vmem:[%s2507 + $0x28] sm:$0xf]
        %v2519 = vld [vmem:[%s2507 + $0x2c] sm:$0xf]
        %v2520 = vld [vmem:[%s2507 + $0x30] sm:$0xf]
        %v2521 = vld [vmem:[%s2507 + $0x34] sm:$0xf]
        %v2522 = vld [vmem:[%s2507 + $0x38] sm:$0xf]
        %v2523 = vld [vmem:[%s2507 + $0x3c] sm:$0xf]
        %v2524 = vld [vmem:[%s2507 + $0x40] sm:$0xf]
        %v2525 = vld [vmem:[%s2507 + $0x44] sm:$0xf]
        %v2526 = vld [vmem:[%s2507 + $0x48] sm:$0xf]
        %v2527 = vld [vmem:[%s2507 + $0x4c] sm:$0xf]
        %v2528 = vld [vmem:[%s2507 + $0x50] sm:$0xf]
        %v2529 = vld [vmem:[%s2507 + $0x54] sm:$0xf]
        %v2530 = vld [vmem:[%s2507 + $0x58] sm:$0xf]
        %v2531 = vld [vmem:[%s2507 + $0x5c] sm:$0xf]
        %v2532 = vld [vmem:[%s2507 + $0x60] sm:$0xf]
        %v2533 = vld [vmem:[%s2507 + $0x64] sm:$0xf]
        %v2534 = vld [vmem:[%s2507 + $0x68] sm:$0xf]
        %v2535 = vld [vmem:[%s2507 + $0x6c] sm:$0xf]
        %v2536 = vld [vmem:[%s2507 + $0x70] sm:$0xf]
        %v2537 = vld [vmem:[%s2507 + $0x74] sm:$0xf]
        %v2538 = vld [vmem:[%s2507 + $0x78] sm:$0xf]
        %v2539 = vld [vmem:[%s2507 + $0x7c] sm:$0xf]
        %s2540 = scalar_lea.vmem [#allocation12], 2
        %v2541 = vld [vmem:[%s2540] sm:$0x1]
        %v2543 = vperm.slane %v2541, 0
        %v2577 = vunpack.c.l.b16 %v2508
        %v2578 = vunpack.c.l.b16 %v2509
        %v2579 = vunpack.c.l.b16 %v2510
        %v2580 = vunpack.c.l.b16 %v2511
        %v2581 = vunpack.c.l.b16 %v2512
        %v2582 = vunpack.c.l.b16 %v2513
        %v2583 = vunpack.c.l.b16 %v2514
        %v2584 = vunpack.c.l.b16 %v2515
        %v2585 = vunpack.c.l.b16 %v2516
        %v2586 = vunpack.c.l.b16 %v2517
        %v2587 = vunpack.c.l.b16 %v2518
        %v2588 = vunpack.c.l.b16 %v2519
        %v2589 = vunpack.c.l.b16 %v2520
        %v2590 = vunpack.c.l.b16 %v2521
        %v2591 = vunpack.c.l.b16 %v2522
        %v2592 = vunpack.c.l.b16 %v2523
        %v2593 = vunpack.c.l.b16 %v2524
        %v2594 = vunpack.c.l.b16 %v2525
        %v2595 = vunpack.c.l.b16 %v2526
        %v2596 = vunpack.c.l.b16 %v2527
        %v2597 = vunpack.c.l.b16 %v2528
        %v2598 = vunpack.c.l.b16 %v2529
        %v2599 = vunpack.c.l.b16 %v2530
        %v2600 = vunpack.c.l.b16 %v2531
        %v2601 = vunpack.c.l.b16 %v2532
        %v2602 = vunpack.c.l.b16 %v2533
        %v2603 = vunpack.c.l.b16 %v2534
        %v2604 = vunpack.c.l.b16 %v2535
        %v2605 = vunpack.c.l.b16 %v2536
        %v2606 = vunpack.c.l.b16 %v2537
        %v2607 = vunpack.c.l.b16 %v2538
        %v2608 = vunpack.c.l.b16 %v2539
        %v2609 = vpack.c.b16 %v2578, %v2577
        %v2610 = vpack.c.b16 %v2580, %v2579
        %v2611 = vpack.c.b16 %v2582, %v2581
        %v2612 = vpack.c.b16 %v2584, %v2583
        %v2613 = vpack.c.b16 %v2586, %v2585
        %v2614 = vpack.c.b16 %v2588, %v2587
        %v2615 = vpack.c.b16 %v2590, %v2589
        %v2616 = vpack.c.b16 %v2592, %v2591
        %v2617 = vpack.c.b16 %v2594, %v2593
        %v2618 = vpack.c.b16 %v2596, %v2595
        %v2619 = vpack.c.b16 %v2598, %v2597
        %v2620 = vpack.c.b16 %v2600, %v2599
        %v2621 = vpack.c.b16 %v2602, %v2601
        %v2622 = vpack.c.b16 %v2604, %v2603
        %v2623 = vpack.c.b16 %v2606, %v2605
        %v2624 = vpack.c.b16 %v2608, %v2607
        %2641 = vmatpush.bf16.msra.mxu0 %v2616
        %2642 = vmatpush.bf16.msra.mxu0 %v2615
        %2643 = vmatpush.bf16.msra.mxu0 %v2614
        %2644 = vmatpush.bf16.msra.mxu0 %v2613
        %2645 = vmatpush.bf16.msra.mxu0 %v2612
        %2646 = vmatpush.bf16.msra.mxu0 %v2611
        %2647 = vmatpush.bf16.msra.mxu0 %v2610
        %2648 = vmatpush.bf16.msra.mxu0 %v2609
        %2649 = vmatmul.bf16.gmra.mxu0 %v2505
        %v2650 = vpop.f32.mrf.mxu0
        %v2651 = vadd.f32 %v2543, %v2650
        %v2652 = vpop.f32.mrf.mxu0
        %2653 = vdwg.mxu0
        %2654 = vmatpush.bf16.msra.mxu0 %v2624
        %2655 = vmatpush.bf16.msra.mxu0 %v2623
        %2656 = vmatpush.bf16.msra.mxu0 %v2622
        %2657 = vmatpush.bf16.msra.mxu0 %v2621
        %2658 = vmatpush.bf16.msra.mxu0 %v2620
        %2659 = vmatpush.bf16.msra.mxu0 %v2619
        %2660 = vmatpush.bf16.msra.mxu0 %v2618
        %2661 = vmatpush.bf16.msra.mxu0 %v2617
        %2662 = vmatmul.bf16.gmra.mxu0 %v2506
        %v2663 = vpop.f32.mrf.mxu0
        %v2664 = vadd.f32 %v2651, %v2663
        %v2665 = vpop.f32.mrf.mxu0
        %2666 = vdwg.mxu0
        %v2667 = vpack.c.bf16 %v2664, %v2664
        %2668 = vst [vmem:[%s491 + $0x2] sm:$0x1] %v2667
        %s2669 = smul.u32 3, %s29
        %p2670 = scmp.lt.s32.totalorder %s28, 0
        %s2671 = scalar_select %p2670, %s28, 0
        %p2672 = scmp.lt.s32.totalorder %s2669, 59
        %s2673 = scalar_select %p2672, %s2669, 59
        %s2674 = smul.addr %s2671, 60
        %s2675 = sadd.s32 %s2673, %s2674
        %s2676 = scalar_lea.vmem %s9, %s2675
        // Predicated region
        $region85: #{hp2m_forward.3} parent=55 // pred_check
          %p2677 = pneg %p257
        $region86: #{hp2m_forward.3} parent=55 // pred_check_branch
          %2679 = sbr.rel (%p2677) target = $region88
        $region87: #{hp2m_forward.3} parent=55 // pred_region
          %s2680 = smul.u32 3, %s29
        $region88: #{hp2m_forward.3} parent=55 // pred_fallthru
          _
      $region56: #{hp2m_forward.3} parent=5 // pred_fallthru
        _
      %p2681 = scmp.le.s32.totalorder 2, %s19
      // Predicated region
      $region89: #{hp2m_forward.3} parent=5 // pred_check
        %p2682 = pneg %p2681
      $region90: #{hp2m_forward.3} parent=5 // pred_check_branch
        %2684 = sbr.rel (%p2682) target = $region92
      $region91: #{hp2m_forward.3} parent=5 // pred_region
        %s2685 = ssub.s32 %s19, 2
        // Predicated region
        $region93: #{hp2m_forward.3} parent=91 // pred_check
          %p2686 = pneg %p263
        $region94: #{hp2m_forward.3} parent=91 // pred_check_branch
          %2688 = sbr.rel (%p2686) target = $region96
        $region95: #{hp2m_forward.3} parent=91 // pred_region
          %s2689 = smul.u32 3, %s31
          %p2690 = scmp.lt.s32.totalorder %s30, 0
          %s2691 = scalar_select %p2690, %s30, 0
          %p2692 = scmp.lt.s32.totalorder %s2689, 59
          %s2693 = scalar_select %p2692, %s2689, 59
          %s2694 = smul.addr %s2691, 60
          %s2695 = sadd.s32 %s2693, %s2694
          %s2696 = scalar_lea.vmem %s9, %s2695
        $region96: #{hp2m_forward.3} parent=91 // pred_fallthru
          _
      $region92: #{hp2m_forward.3} parent=5 // pred_fallthru
        _
    $region6: #{hp2m_forward.3} parent=1 // loop_footer
      %s23 = sadd.s32 1, %s19
    $region7: #{hp2m_forward.3} parent=1 // loop_footer_branch
      %18 = sbr.rel target = $region3
    $region8: #{hp2m_forward.3} parent=1 // loop_exit
      _
    %2697 = vsyncpa [#allocation3], 1
    %s2698 = scalar_lea.sflag [#allocation3], 1
    %2699 = vsyncpa %s2698, 1
    %2700 = vsyncpa [#allocation5], 1
    %2701 = vsyncpa [#allocation8], 1
    %2702 = vsyncpa [#allocation11], 1

</llo_original>
